<compile_context>
chip_gen: v7x
topology: tpu7x:2x2x1
jax: 0.10.0
libtpu: 0.0.40
codegen_flags: <defaults>
</compile_context>

<pallas_src>
import functools

import jax
import jax.numpy as jnp
from jax.experimental import pallas as pl
from jax.experimental.pallas import tpu as pltpu


def _round_up(x: int, m: int) -> int:
    return ((x + m - 1) // m) * m


def _make_pinnkan_kernel(degree: int, alpha: float, beta: float, n_layers: int):
    """Fused kernel for the whole Jacobi-KAN stack (batch on the lane axis).

    Kernel args (per grid step over batch tiles):
      x_ref : (in0, BT)                  float32 activation tile (transposed)
      per layer l (if degree > 0):
        wT_ref : (degree, out_l, in_l)   per-degree transposed coeffs (d=1..D)
        b_ref  : (out_l, 1)              bias = sum_i coeff[d=0, i, o]
      per layer l (if degree == 0):
        b_ref  : (out_l, 1)
      o_ref : (out_last, BT)
    """
    # Pre-fold the three-term recurrence constants (already divided by A_n).
    rec = []
    for n in range(2, degree + 1):
        A_n = 2 * n * (n + alpha + beta) * (2 * n + alpha + beta - 2)
        k1 = (2 * n + alpha + beta - 1) * (2 * n + alpha + beta) * (2 * n + alpha + beta - 2) / A_n
        k2 = (2 * n + alpha + beta - 1) * (alpha ** 2 - beta ** 2) / A_n
        k3 = (n + alpha + beta - 1) * (n + alpha - 1) * (n + beta - 1) * (2 * n + alpha + beta) / A_n
        rec.append((k1, k2, k3))
    p1_c0 = 0.5 * (alpha - beta)
    p1_c1 = 0.5 * (alpha + beta + 2.0)

    def kernel(x_ref, *refs):
        o_ref = refs[-1]
        param_refs = refs[:-1]

        h = x_ref[...].astype(jnp.float32)           # (in0, BT)
        idx = 0
        for _ in range(n_layers):
            if degree > 0:
                wT_ref = param_refs[idx]              # (degree, out, in)
                b_ref = param_refs[idx + 1]           # (out, 1)
                idx += 2
            else:
                wT_ref = None
                b_ref = param_refs[idx]
                idx += 1

            bias = b_ref[...]                         # (out, 1)
            t = jnp.tanh(h)                           # (in, BT)  -- EUP

            if degree == 0:
                # Only the constant P_0 = 1 basis: output is just the bias.
                h = jnp.zeros((bias.shape[0], t.shape[1]), jnp.float32) + bias
                continue

            # P_1 and three-term recurrence (elementwise on the VPU).  Each
            # polynomial is consumed by an MXU matmul as soon as it exists:
            #   acc(out, BT) += W_d^T(out, in) @ P_d(in, BT)
            # No concatenate, only two polynomials live at any time.
            p_nm2 = jnp.ones_like(t)                  # P_0
            p_nm1 = p1_c0 + p1_c1 * t                 # P_1
            acc = jnp.dot(wT_ref[0], p_nm1,
                          preferred_element_type=jnp.float32) + bias
            for d, (k1, k2, k3) in enumerate(rec, start=2):
                p_n = k1 * t * p_nm1 - k3 * p_nm2
                if k2 != 0.0:                         # alpha == beta -> drops
                    p_n = p_n - k2 * p_nm1
                acc = acc + jnp.dot(wT_ref[d - 1], p_n,
                                    preferred_element_type=jnp.float32)
                p_nm2, p_nm1 = p_nm1, p_n
            h = acc                                   # (out, BT)

        o_ref[...] = h.astype(o_ref.dtype)

    return kernel


@functools.partial(jax.jit,
                   static_argnames=("network", "degree", "alpha", "beta", "b_tile"))
def pinnkan_forward(x, layer_coeffs, *, network, degree, alpha=1.0, beta=1.0,
                    b_tile=4096):
    """PINNKAN.forward == Jacobikan.forward, fused into a single Pallas kernel.

    x: (B, network[0]); layer_coeffs[i]: (degree+1, network[i], network[i+1])
    (d-major layout).  min/max args of PINNKAN.forward are unused upstream.
    """
    network = tuple(network)
    x = jnp.reshape(x, (-1, network[0])).astype(jnp.float32)
    B = x.shape[0]

    # Batch lives on the lane axis -> tile must be a multiple of 128.
    LANE = 128
    b_tile = max(LANE, _round_up(int(b_tile), LANE))
    # Cap at ceil(B/2) (rounded to 128) so large batches always give >= 2
    # grid steps -> both v7x TensorCores get work on the "parallel" axis.
    bt = min(b_tile, _round_up(pl.cdiv(max(B, 1), 2), LANE))
    num_tiles = pl.cdiv(B, bt)
    B_pad = num_tiles * bt

    x_t = jnp.transpose(x)                            # (in0, B) lane-dense
    if B_pad != B:
        x_t = jnp.pad(x_t, ((0, 0), (0, B_pad - B)))

    # Per-layer params: wT = coeffs[1:] transposed to (degree, out, in);
    # bias = column-sum of the d=0 coeffs, shaped (out, 1).
    flat_params = []
    in_specs = [pl.BlockSpec((network[0], bt), lambda i: (0, i))]
    for c in layer_coeffs:                            # c: (degree+1, in, out)
        in_d, out_d = c.shape[1], c.shape[2]
        bias = jnp.sum(c[0], axis=0)[:, None]         # (out, 1)
        if degree > 0:
            wT = jnp.transpose(c[1:], (0, 2, 1))      # (degree, out, in)
            flat_params.append(wT)
            # Constant index_map -> weights stay VMEM-resident across steps.
            in_specs.append(
                pl.BlockSpec((degree, out_d, in_d), lambda i: (0, 0, 0)))
        flat_params.append(bias)
        in_specs.append(pl.BlockSpec((out_d, 1), lambda i: (0, 0)))

    out_dim = network[-1]
    kernel = _make_pinnkan_kernel(degree, float(alpha), float(beta),
                                  len(layer_coeffs))

    y_t = pl.pallas_call(
        kernel,
        out_shape=jax.ShapeDtypeStruct((out_dim, B_pad), jnp.float32),
        grid=(num_tiles,),
        in_specs=in_specs,
        out_specs=pl.BlockSpec((out_dim, bt), lambda i: (0, i)),
        compiler_params=pltpu.CompilerParams(
            dimension_semantics=("parallel",)),
    )(x_t, *flat_params)

    # Padded batch columns hold garbage and are sliced off here.
    return jnp.transpose(y_t)[:B]


def _reference_forward(x, layer_coeffs, *, network, degree, alpha=1.0, beta=1.0):
    """Pure-JAX reference mirroring the PyTorch code (for correctness check)."""
    x = jnp.reshape(x, (-1, network[0]))
    for c in layer_coeffs:  # c: (degree+1, in, out)
        xt = jnp.tanh(x)
        polys = [jnp.ones_like(xt)]
        if degree > 0:
            polys.append(0.5 * (alpha - beta) + (alpha + beta + 2.0) * xt / 2.0)
        for n in range(2, degree + 1):
            A_n = 2 * n * (n + alpha + beta) * (2 * n + alpha + beta - 2)
            t1 = (2 * n + alpha + beta - 1) * (2 * n + alpha + beta) * (2 * n + alpha + beta - 2) * xt * polys[n - 1]
            t2 = (2 * n + alpha + beta - 1) * (alpha ** 2 - beta ** 2) * polys[n - 1]
            t3 = (n + alpha + beta - 1) * (n + alpha - 1) * (n + beta - 1) * (2 * n + alpha + beta) * polys[n - 2]
            polys.append((t1 - t2 - t3) / A_n)
        jac = jnp.stack(polys, axis=-1)                      # (B, in, D+1)
        coeff_iod = jnp.transpose(c, (1, 2, 0))              # (in, out, D+1)
        x = jnp.einsum('bid,iod->bo', jac, coeff_iod)
    return x


if __name__ == "__main__":
    network = (4, 32, 16, 2)   # Jacobikan([4, 32, 16, 2]) -> 3 JacobiKANLayers
    degree = 4                 # Jacobikan default degree
    alpha = beta = 1.0         # JacobiKANLayer defaults
    B = 200                    # -> bt=128, 2 grid tiles, 56 padded columns

    key = jax.random.PRNGKey(0)
    keys = jax.random.split(key, len(network) + 1)

    x = jax.random.uniform(keys[0], (B, network[0]), dtype=jnp.float32,
                           minval=-1.0, maxval=1.0)

    # Deterministic xavier_normal_-style init of jacobi_coeffs (in, out, D+1),
    # then re-layout to (D+1, in, out) d-major for the kernel wrapper.
    layer_coeffs = []
    for i in range(len(network) - 1):
        in_d, out_d = network[i], network[i + 1]
        fan_in = out_d * (degree + 1)
        fan_out = in_d * (degree + 1)
        std = (2.0 / (fan_in + fan_out)) ** 0.5
        c_iod = std * jax.random.normal(keys[i + 1], (in_d, out_d, degree + 1),
                                        dtype=jnp.float32)
        layer_coeffs.append(jnp.transpose(c_iod, (2, 0, 1)))  # (D+1, in, out)
    layer_coeffs = tuple(layer_coeffs)

    y = pinnkan_forward(x, layer_coeffs, network=network, degree=degree,
                        alpha=alpha, beta=beta)
    y = jax.block_until_ready(y)

    y_ref = _reference_forward(x, layer_coeffs, network=network, degree=degree,
                               alpha=alpha, beta=beta)
    assert y.shape == (B, network[-1])
    assert jnp.allclose(y, y_ref, atol=1e-4, rtol=1e-4), "mismatch vs reference"

    print("KERNEL_OK")
</pallas_src>

<mosaic_0001>
module attributes {stable_mosaic.version = 11 : i64} {
  func.func @kernel(%arg0: i32, %arg1: memref<4x128xf32, #tpu.memory_space<vmem>>, %arg2: memref<4x32x4xf32, #tpu.memory_space<vmem>>, %arg3: memref<32x1xf32, #tpu.memory_space<vmem>>, %arg4: memref<4x16x32xf32, #tpu.memory_space<vmem>>, %arg5: memref<16x1xf32, #tpu.memory_space<vmem>>, %arg6: memref<4x2x16xf32, #tpu.memory_space<vmem>>, %arg7: memref<2x1xf32, #tpu.memory_space<vmem>>, %arg8: memref<2x128xf32, #tpu.memory_space<vmem>>) attributes {dimension_semantics = [#tpu.dimension_semantics<parallel>], iteration_bounds = array<i64: 2>, scalar_prefetch = 0 : i64, scratch_operands = 0 : i64, tpu.core_type = #tpu.core_type<tc>, window_params = [{transform_indices = @transform_0, window_bounds = array<i64: 4, 128>}, {pipeline_mode = #tpu.pipeline_mode<synchronous>, transform_indices = @transform_1, window_bounds = array<i64: 4, 32, 4>}, {pipeline_mode = #tpu.pipeline_mode<synchronous>, transform_indices = @transform_2, window_bounds = array<i64: 32, 1>}, {pipeline_mode = #tpu.pipeline_mode<synchronous>, transform_indices = @transform_3, window_bounds = array<i64: 4, 16, 32>}, {pipeline_mode = #tpu.pipeline_mode<synchronous>, transform_indices = @transform_4, window_bounds = array<i64: 16, 1>}, {pipeline_mode = #tpu.pipeline_mode<synchronous>, transform_indices = @transform_5, window_bounds = array<i64: 4, 2, 16>}, {pipeline_mode = #tpu.pipeline_mode<synchronous>, transform_indices = @transform_6, window_bounds = array<i64: 2, 1>}, {transform_indices = @transform_7, window_bounds = array<i64: 2, 128>}]} {
    %c0 = arith.constant 0 : index
    %c0_0 = arith.constant 0 : index
    %0 = vector.load %arg1[%c0, %c0_0] : memref<4x128xf32, #tpu.memory_space<vmem>>, vector<4x128xf32>
    %c0_1 = arith.constant 0 : index
    %c0_2 = arith.constant 0 : index
    %1 = vector.load %arg3[%c0_1, %c0_2] : memref<32x1xf32, #tpu.memory_space<vmem>>, vector<32x1xf32>
    %2 = math.tanh %0 : vector<4x128xf32>
    %cst = arith.constant 1.000000e+00 : f32
    %3 = vector.broadcast %cst : f32 to vector<4x128xf32>
    %cst_3 = arith.constant 2.000000e+00 : f32
    %4 = vector.broadcast %cst_3 : f32 to vector<4x128xf32>
    %5 = arith.mulf %4, %2 : vector<4x128xf32>
    %cst_4 = arith.constant 0.000000e+00 : f32
    %6 = vector.broadcast %cst_4 : f32 to vector<4x128xf32>
    %7 = arith.addf %6, %5 : vector<4x128xf32>
    %c0_5 = arith.constant 0 : index
    %c0_6 = arith.constant 0 : index
    %c0_7 = arith.constant 0 : index
    %8 = vector.load %arg2[%c0_5, %c0_6, %c0_7] : memref<4x32x4xf32, #tpu.memory_space<vmem>>, vector<1x32x4xf32>
    %9 = vector.shape_cast %8 : vector<1x32x4xf32> to vector<32x4xf32>
    %cst_8 = arith.constant dense<0.000000e+00> : vector<32x128xf32>
    %10 = tpu.matmul %9, %7, %cst_8 {dimension_numbers = #tpu.dot_dimension_numbers<[1], [0], [0], [1], [0, 0, 1, 1], [], []>} : vector<32x4xf32>, vector<4x128xf32>, vector<32x128xf32> -> vector<32x128xf32>
    %11 = vector.broadcast %1 : vector<32x1xf32> to vector<32x128xf32>
    %12 = arith.addf %10, %11 : vector<32x128xf32>
    %cst_9 = arith.constant 1.875000e+00 : f32
    %13 = vector.broadcast %cst_9 : f32 to vector<4x128xf32>
    %14 = arith.mulf %13, %2 : vector<4x128xf32>
    %15 = arith.mulf %14, %7 : vector<4x128xf32>
    %cst_10 = arith.constant 1.125000e+00 : f32
    %16 = vector.broadcast %cst_10 : f32 to vector<4x128xf32>
    %17 = arith.mulf %16, %3 : vector<4x128xf32>
    %18 = arith.subf %15, %17 : vector<4x128xf32>
    %c1 = arith.constant 1 : index
    %c0_11 = arith.constant 0 : index
    %c0_12 = arith.constant 0 : index
    %19 = vector.load %arg2[%c1, %c0_11, %c0_12] : memref<4x32x4xf32, #tpu.memory_space<vmem>>, vector<1x32x4xf32>
    %20 = vector.shape_cast %19 : vector<1x32x4xf32> to vector<32x4xf32>
    %cst_13 = arith.constant dense<0.000000e+00> : vector<32x128xf32>
    %21 = tpu.matmul %20, %18, %cst_13 {dimension_numbers = #tpu.dot_dimension_numbers<[1], [0], [0], [1], [0, 0, 1, 1], [], []>} : vector<32x4xf32>, vector<4x128xf32>, vector<32x128xf32> -> vector<32x128xf32>
    %22 = arith.addf %12, %21 : vector<32x128xf32>
    %cst_14 = arith.constant 1.86666667 : f32
    %23 = vector.broadcast %cst_14 : f32 to vector<4x128xf32>
    %24 = arith.mulf %23, %2 : vector<4x128xf32>
    %25 = arith.mulf %24, %18 : vector<4x128xf32>
    %cst_15 = arith.constant 1.600000e+00 : f32
    %26 = vector.broadcast %cst_15 : f32 to vector<4x128xf32>
    %27 = arith.mulf %26, %7 : vector<4x128xf32>
    %28 = arith.subf %25, %27 : vector<4x128xf32>
    %c2 = arith.constant 2 : index
    %c0_16 = arith.constant 0 : index
    %c0_17 = arith.constant 0 : index
    %29 = vector.load %arg2[%c2, %c0_16, %c0_17] : memref<4x32x4xf32, #tpu.memory_space<vmem>>, vector<1x32x4xf32>
    %30 = vector.shape_cast %29 : vector<1x32x4xf32> to vector<32x4xf32>
    %cst_18 = arith.constant dense<0.000000e+00> : vector<32x128xf32>
    %31 = tpu.matmul %30, %28, %cst_18 {dimension_numbers = #tpu.dot_dimension_numbers<[1], [0], [0], [1], [0, 0, 1, 1], [], []>} : vector<32x4xf32>, vector<4x128xf32>, vector<32x128xf32> -> vector<32x128xf32>
    %32 = arith.addf %22, %31 : vector<32x128xf32>
    %cst_19 = arith.constant 1.875000e+00 : f32
    %33 = vector.broadcast %cst_19 : f32 to vector<4x128xf32>
    %34 = arith.mulf %33, %2 : vector<4x128xf32>
    %35 = arith.mulf %34, %28 : vector<4x128xf32>
    %cst_20 = arith.constant 2.08333325 : f32
    %36 = vector.broadcast %cst_20 : f32 to vector<4x128xf32>
    %37 = arith.mulf %36, %18 : vector<4x128xf32>
    %38 = arith.subf %35, %37 : vector<4x128xf32>
    %c3 = arith.constant 3 : index
    %c0_21 = arith.constant 0 : index
    %c0_22 = arith.constant 0 : index
    %39 = vector.load %arg2[%c3, %c0_21, %c0_22] : memref<4x32x4xf32, #tpu.memory_space<vmem>>, vector<1x32x4xf32>
    %40 = vector.shape_cast %39 : vector<1x32x4xf32> to vector<32x4xf32>
    %cst_23 = arith.constant dense<0.000000e+00> : vector<32x128xf32>
    %41 = tpu.matmul %40, %38, %cst_23 {dimension_numbers = #tpu.dot_dimension_numbers<[1], [0], [0], [1], [0, 0, 1, 1], [], []>} : vector<32x4xf32>, vector<4x128xf32>, vector<32x128xf32> -> vector<32x128xf32>
    %42 = arith.addf %32, %41 : vector<32x128xf32>
    %c0_24 = arith.constant 0 : index
    %c0_25 = arith.constant 0 : index
    %43 = vector.load %arg5[%c0_24, %c0_25] : memref<16x1xf32, #tpu.memory_space<vmem>>, vector<16x1xf32>
    %44 = math.tanh %42 : vector<32x128xf32>
    %cst_26 = arith.constant 1.000000e+00 : f32
    %45 = vector.broadcast %cst_26 : f32 to vector<32x128xf32>
    %cst_27 = arith.constant 2.000000e+00 : f32
    %46 = vector.broadcast %cst_27 : f32 to vector<32x128xf32>
    %47 = arith.mulf %46, %44 : vector<32x128xf32>
    %cst_28 = arith.constant 0.000000e+00 : f32
    %48 = vector.broadcast %cst_28 : f32 to vector<32x128xf32>
    %49 = arith.addf %48, %47 : vector<32x128xf32>
    %c0_29 = arith.constant 0 : index
    %c0_30 = arith.constant 0 : index
    %c0_31 = arith.constant 0 : index
    %50 = vector.load %arg4[%c0_29, %c0_30, %c0_31] : memref<4x16x32xf32, #tpu.memory_space<vmem>>, vector<1x16x32xf32>
    %51 = vector.shape_cast %50 : vector<1x16x32xf32> to vector<16x32xf32>
    %cst_32 = arith.constant dense<0.000000e+00> : vector<16x128xf32>
    %52 = tpu.matmul %51, %49, %cst_32 {dimension_numbers = #tpu.dot_dimension_numbers<[1], [0], [0], [1], [0, 0, 1, 1], [], []>} : vector<16x32xf32>, vector<32x128xf32>, vector<16x128xf32> -> vector<16x128xf32>
    %53 = vector.broadcast %43 : vector<16x1xf32> to vector<16x128xf32>
    %54 = arith.addf %52, %53 : vector<16x128xf32>
    %cst_33 = arith.constant 1.875000e+00 : f32
    %55 = vector.broadcast %cst_33 : f32 to vector<32x128xf32>
    %56 = arith.mulf %55, %44 : vector<32x128xf32>
    %57 = arith.mulf %56, %49 : vector<32x128xf32>
    %cst_34 = arith.constant 1.125000e+00 : f32
    %58 = vector.broadcast %cst_34 : f32 to vector<32x128xf32>
    %59 = arith.mulf %58, %45 : vector<32x128xf32>
    %60 = arith.subf %57, %59 : vector<32x128xf32>
    %c1_35 = arith.constant 1 : index
    %c0_36 = arith.constant 0 : index
    %c0_37 = arith.constant 0 : index
    %61 = vector.load %arg4[%c1_35, %c0_36, %c0_37] : memref<4x16x32xf32, #tpu.memory_space<vmem>>, vector<1x16x32xf32>
    %62 = vector.shape_cast %61 : vector<1x16x32xf32> to vector<16x32xf32>
    %cst_38 = arith.constant dense<0.000000e+00> : vector<16x128xf32>
    %63 = tpu.matmul %62, %60, %cst_38 {dimension_numbers = #tpu.dot_dimension_numbers<[1], [0], [0], [1], [0, 0, 1, 1], [], []>} : vector<16x32xf32>, vector<32x128xf32>, vector<16x128xf32> -> vector<16x128xf32>
    %64 = arith.addf %54, %63 : vector<16x128xf32>
    %cst_39 = arith.constant 1.86666667 : f32
    %65 = vector.broadcast %cst_39 : f32 to vector<32x128xf32>
    %66 = arith.mulf %65, %44 : vector<32x128xf32>
    %67 = arith.mulf %66, %60 : vector<32x128xf32>
    %cst_40 = arith.constant 1.600000e+00 : f32
    %68 = vector.broadcast %cst_40 : f32 to vector<32x128xf32>
    %69 = arith.mulf %68, %49 : vector<32x128xf32>
    %70 = arith.subf %67, %69 : vector<32x128xf32>
    %c2_41 = arith.constant 2 : index
    %c0_42 = arith.constant 0 : index
    %c0_43 = arith.constant 0 : index
    %71 = vector.load %arg4[%c2_41, %c0_42, %c0_43] : memref<4x16x32xf32, #tpu.memory_space<vmem>>, vector<1x16x32xf32>
    %72 = vector.shape_cast %71 : vector<1x16x32xf32> to vector<16x32xf32>
    %cst_44 = arith.constant dense<0.000000e+00> : vector<16x128xf32>
    %73 = tpu.matmul %72, %70, %cst_44 {dimension_numbers = #tpu.dot_dimension_numbers<[1], [0], [0], [1], [0, 0, 1, 1], [], []>} : vector<16x32xf32>, vector<32x128xf32>, vector<16x128xf32> -> vector<16x128xf32>
    %74 = arith.addf %64, %73 : vector<16x128xf32>
    %cst_45 = arith.constant 1.875000e+00 : f32
    %75 = vector.broadcast %cst_45 : f32 to vector<32x128xf32>
    %76 = arith.mulf %75, %44 : vector<32x128xf32>
    %77 = arith.mulf %76, %70 : vector<32x128xf32>
    %cst_46 = arith.constant 2.08333325 : f32
    %78 = vector.broadcast %cst_46 : f32 to vector<32x128xf32>
    %79 = arith.mulf %78, %60 : vector<32x128xf32>
    %80 = arith.subf %77, %79 : vector<32x128xf32>
    %c3_47 = arith.constant 3 : index
    %c0_48 = arith.constant 0 : index
    %c0_49 = arith.constant 0 : index
    %81 = vector.load %arg4[%c3_47, %c0_48, %c0_49] : memref<4x16x32xf32, #tpu.memory_space<vmem>>, vector<1x16x32xf32>
    %82 = vector.shape_cast %81 : vector<1x16x32xf32> to vector<16x32xf32>
    %cst_50 = arith.constant dense<0.000000e+00> : vector<16x128xf32>
    %83 = tpu.matmul %82, %80, %cst_50 {dimension_numbers = #tpu.dot_dimension_numbers<[1], [0], [0], [1], [0, 0, 1, 1], [], []>} : vector<16x32xf32>, vector<32x128xf32>, vector<16x128xf32> -> vector<16x128xf32>
    %84 = arith.addf %74, %83 : vector<16x128xf32>
    %c0_51 = arith.constant 0 : index
    %c0_52 = arith.constant 0 : index
    %85 = vector.load %arg7[%c0_51, %c0_52] : memref<2x1xf32, #tpu.memory_space<vmem>>, vector<2x1xf32>
    %86 = math.tanh %84 : vector<16x128xf32>
    %cst_53 = arith.constant 1.000000e+00 : f32
    %87 = vector.broadcast %cst_53 : f32 to vector<16x128xf32>
    %cst_54 = arith.constant 2.000000e+00 : f32
    %88 = vector.broadcast %cst_54 : f32 to vector<16x128xf32>
    %89 = arith.mulf %88, %86 : vector<16x128xf32>
    %cst_55 = arith.constant 0.000000e+00 : f32
    %90 = vector.broadcast %cst_55 : f32 to vector<16x128xf32>
    %91 = arith.addf %90, %89 : vector<16x128xf32>
    %c0_56 = arith.constant 0 : index
    %c0_57 = arith.constant 0 : index
    %c0_58 = arith.constant 0 : index
    %92 = vector.load %arg6[%c0_56, %c0_57, %c0_58] : memref<4x2x16xf32, #tpu.memory_space<vmem>>, vector<1x2x16xf32>
    %93 = vector.shape_cast %92 : vector<1x2x16xf32> to vector<2x16xf32>
    %cst_59 = arith.constant dense<0.000000e+00> : vector<2x128xf32>
    %94 = tpu.matmul %93, %91, %cst_59 {dimension_numbers = #tpu.dot_dimension_numbers<[1], [0], [0], [1], [0, 0, 1, 1], [], []>} : vector<2x16xf32>, vector<16x128xf32>, vector<2x128xf32> -> vector<2x128xf32>
    %95 = vector.broadcast %85 : vector<2x1xf32> to vector<2x128xf32>
    %96 = arith.addf %94, %95 : vector<2x128xf32>
    %cst_60 = arith.constant 1.875000e+00 : f32
    %97 = vector.broadcast %cst_60 : f32 to vector<16x128xf32>
    %98 = arith.mulf %97, %86 : vector<16x128xf32>
    %99 = arith.mulf %98, %91 : vector<16x128xf32>
    %cst_61 = arith.constant 1.125000e+00 : f32
    %100 = vector.broadcast %cst_61 : f32 to vector<16x128xf32>
    %101 = arith.mulf %100, %87 : vector<16x128xf32>
    %102 = arith.subf %99, %101 : vector<16x128xf32>
    %c1_62 = arith.constant 1 : index
    %c0_63 = arith.constant 0 : index
    %c0_64 = arith.constant 0 : index
    %103 = vector.load %arg6[%c1_62, %c0_63, %c0_64] : memref<4x2x16xf32, #tpu.memory_space<vmem>>, vector<1x2x16xf32>
    %104 = vector.shape_cast %103 : vector<1x2x16xf32> to vector<2x16xf32>
    %cst_65 = arith.constant dense<0.000000e+00> : vector<2x128xf32>
    %105 = tpu.matmul %104, %102, %cst_65 {dimension_numbers = #tpu.dot_dimension_numbers<[1], [0], [0], [1], [0, 0, 1, 1], [], []>} : vector<2x16xf32>, vector<16x128xf32>, vector<2x128xf32> -> vector<2x128xf32>
    %106 = arith.addf %96, %105 : vector<2x128xf32>
    %cst_66 = arith.constant 1.86666667 : f32
    %107 = vector.broadcast %cst_66 : f32 to vector<16x128xf32>
    %108 = arith.mulf %107, %86 : vector<16x128xf32>
    %109 = arith.mulf %108, %102 : vector<16x128xf32>
    %cst_67 = arith.constant 1.600000e+00 : f32
    %110 = vector.broadcast %cst_67 : f32 to vector<16x128xf32>
    %111 = arith.mulf %110, %91 : vector<16x128xf32>
    %112 = arith.subf %109, %111 : vector<16x128xf32>
    %c2_68 = arith.constant 2 : index
    %c0_69 = arith.constant 0 : index
    %c0_70 = arith.constant 0 : index
    %113 = vector.load %arg6[%c2_68, %c0_69, %c0_70] : memref<4x2x16xf32, #tpu.memory_space<vmem>>, vector<1x2x16xf32>
    %114 = vector.shape_cast %113 : vector<1x2x16xf32> to vector<2x16xf32>
    %cst_71 = arith.constant dense<0.000000e+00> : vector<2x128xf32>
    %115 = tpu.matmul %114, %112, %cst_71 {dimension_numbers = #tpu.dot_dimension_numbers<[1], [0], [0], [1], [0, 0, 1, 1], [], []>} : vector<2x16xf32>, vector<16x128xf32>, vector<2x128xf32> -> vector<2x128xf32>
    %116 = arith.addf %106, %115 : vector<2x128xf32>
    %cst_72 = arith.constant 1.875000e+00 : f32
    %117 = vector.broadcast %cst_72 : f32 to vector<16x128xf32>
    %118 = arith.mulf %117, %86 : vector<16x128xf32>
    %119 = arith.mulf %118, %112 : vector<16x128xf32>
    %cst_73 = arith.constant 2.08333325 : f32
    %120 = vector.broadcast %cst_73 : f32 to vector<16x128xf32>
    %121 = arith.mulf %120, %102 : vector<16x128xf32>
    %122 = arith.subf %119, %121 : vector<16x128xf32>
    %c3_74 = arith.constant 3 : index
    %c0_75 = arith.constant 0 : index
    %c0_76 = arith.constant 0 : index
    %123 = vector.load %arg6[%c3_74, %c0_75, %c0_76] : memref<4x2x16xf32, #tpu.memory_space<vmem>>, vector<1x2x16xf32>
    %124 = vector.shape_cast %123 : vector<1x2x16xf32> to vector<2x16xf32>
    %cst_77 = arith.constant dense<0.000000e+00> : vector<2x128xf32>
    %125 = tpu.matmul %124, %122, %cst_77 {dimension_numbers = #tpu.dot_dimension_numbers<[1], [0], [0], [1], [0, 0, 1, 1], [], []>} : vector<2x16xf32>, vector<16x128xf32>, vector<2x128xf32> -> vector<2x128xf32>
    %126 = arith.addf %116, %125 : vector<2x128xf32>
    %c0_78 = arith.constant 0 : index
    %c0_79 = arith.constant 0 : index
    %127 = vector.load %arg8[%c0_78, %c0_79] : memref<2x128xf32, #tpu.memory_space<vmem>>, vector<2x128xf32>
    tpu.vector_store %arg8[%c0_78, %c0_79], %126 {strides = array<i32>} : memref<2x128xf32, #tpu.memory_space<vmem>>, vector<2x128xf32>,
    return
  }
  func.func @transform_0(%arg0: i32) -> (i32, i32) {
    %c0_i32 = arith.constant 0 : i32
    %c0_i32_0 = arith.constant 0 : i32
    return %c0_i32, %arg0 : i32, i32
  }
  func.func @transform_1(%arg0: i32) -> (i32, i32, i32) {
    %c0_i32 = arith.constant 0 : i32
    %c0_i32_0 = arith.constant 0 : i32
    %c0_i32_1 = arith.constant 0 : i32
    %c0_i32_2 = arith.constant 0 : i32
    return %c0_i32, %c0_i32_0, %c0_i32_1 : i32, i32, i32
  }
  func.func @transform_2(%arg0: i32) -> (i32, i32) {
    %c0_i32 = arith.constant 0 : i32
    %c0_i32_0 = arith.constant 0 : i32
    %c0_i32_1 = arith.constant 0 : i32
    return %c0_i32, %c0_i32_0 : i32, i32
  }
  func.func @transform_3(%arg0: i32) -> (i32, i32, i32) {
    %c0_i32 = arith.constant 0 : i32
    %c0_i32_0 = arith.constant 0 : i32
    %c0_i32_1 = arith.constant 0 : i32
    %c0_i32_2 = arith.constant 0 : i32
    return %c0_i32, %c0_i32_0, %c0_i32_1 : i32, i32, i32
  }
  func.func @transform_4(%arg0: i32) -> (i32, i32) {
    %c0_i32 = arith.constant 0 : i32
    %c0_i32_0 = arith.constant 0 : i32
    %c0_i32_1 = arith.constant 0 : i32
    return %c0_i32, %c0_i32_0 : i32, i32
  }
  func.func @transform_5(%arg0: i32) -> (i32, i32, i32) {
    %c0_i32 = arith.constant 0 : i32
    %c0_i32_0 = arith.constant 0 : i32
    %c0_i32_1 = arith.constant 0 : i32
    %c0_i32_2 = arith.constant 0 : i32
    return %c0_i32, %c0_i32_0, %c0_i32_1 : i32, i32, i32
  }
  func.func @transform_6(%arg0: i32) -> (i32, i32) {
    %c0_i32 = arith.constant 0 : i32
    %c0_i32_0 = arith.constant 0 : i32
    %c0_i32_1 = arith.constant 0 : i32
    return %c0_i32, %c0_i32_0 : i32, i32
  }
  func.func @transform_7(%arg0: i32) -> (i32, i32) {
    %c0_i32 = arith.constant 0 : i32
    %c0_i32_0 = arith.constant 0 : i32
    return %c0_i32, %arg0 : i32, i32
  }
}

</mosaic_0001>

<llo_original>
// kernel: pinnkan_forward.1
$region0: #{pinnkan_forward.1}
  #allocation0 [shape = 'u32[]', space=smem, size = 0x4, offset = 0x4, fixed_abs, tag = 'smem constant byte address 0x4 - core index']
  #allocation1 [shape = 'u32[144,128]{1,0:T(1,128)}', space=vmem, size = 0x12000, scoped, tag = 'internal scratch']
  %s0 = inlined_call_operand.vmem [shape: f32[4,256], index: 0, kind: input, shape index: {}]
  %s1 = inlined_call_operand.vmem [shape: f32[4,32,4], index: 1, kind: input, shape index: {}]
  %s2 = inlined_call_operand.vmem [shape: f32[32,1], index: 2, kind: input, shape index: {}]
  %s3 = inlined_call_operand.vmem [shape: f32[4,16,32], index: 3, kind: input, shape index: {}]
  %s4 = inlined_call_operand.vmem [shape: f32[16,1], index: 4, kind: input, shape index: {}]
  %s5 = inlined_call_operand.vmem [shape: f32[4,2,16], index: 5, kind: input, shape index: {}]
  %s6 = inlined_call_operand.vmem [shape: f32[2,1], index: 6, kind: input, shape index: {}]
  %s7 = inlined_call_operand.hbm [shape: f32[2,256], index: 7, kind: output, shape index: {}]
  %s8 = sld [smem:[#allocation0]]
  $region61: #{pinnkan_forward.1} parent=0
    _
  %s10 = ssub.s32 1, %s8
  %s11 = scalar_select 0, %s10, %s8
  $region1: #{pinnkan_forward.1} parent=0
    #allocation2 [shape = 'u8[2048]{0}', space=vmem, size = 0x800, scoped, tag = 'output window, operand 0']
    #allocation3 [shape = 's32[2]{0}', space=sflag, size = 0x8, scoped, tag = 'scoped memory for pinnkan_forward.1']
    %12 = vsyncpa [#allocation3], 0
    %s13 = scalar_lea.sflag [#allocation3], 1
    %14 = vsyncpa %s13, 0
    loop: start=0, step=1, limit=4
    $region2: #{pinnkan_forward.1} parent=1 // loop_pre_header
      _
    $region3: #{pinnkan_forward.1} parent=1 // loop_header
      %s16 = sphi 0, %s20
      %p17 = scmp.ge.s32.totalorder %s16, 4
      %s26 = sphi 0, %s28
      %s29 = sphi 0, %s26
      %s30 = sphi 0, %s29
      %s46 = sphi 0, %s30
      %s50 = sphi 0, %s50
      %s52 = sphi 0, %s50
      %s53 = sphi 0, %s52
      %s67 = sphi 0, %s53
      %s71 = sphi 0, %s71
      %s73 = sphi 0, %s71
      %s74 = sphi 0, %s73
      %s88 = sphi 0, %s74
      %s92 = sphi 0, %s92
      %s94 = sphi 0, %s92
      %s95 = sphi 0, %s94
      %s109 = sphi 0, %s95
      %s113 = sphi 0, %s113
      %s115 = sphi 0, %s113
      %s116 = sphi 0, %s115
      %s130 = sphi 0, %s116
      %s134 = sphi 0, %s134
      %s136 = sphi 0, %s134
      %s137 = sphi 0, %s136
      %s151 = sphi 0, %s137
      %s155 = sphi 0, %s155
      %s157 = sphi 0, %s155
      %s158 = sphi 0, %s157
      %s172 = sphi 0, %s158
      %s178 = sphi 0, %s180
      %s181 = sphi 0, %s178
      %s182 = sphi 0, %s181
      %s198 = sphi 0, %s182
    $region4: #{pinnkan_forward.1} parent=1 // loop_header_branch
      %19 = sbr.rel (%p17) target = $region8
    $region5: #{pinnkan_forward.1} parent=1 // loop_body
      %s21 = ssub.s32 %s16, 1
      %s22 = ssub.s32 %s16, 2
      %s23 = sadd.s32 %s16, 1
      %s24 = ssub.s32 %s16, %s23
      %p25 = scmp.eq.s32.totalorder %s24, 0
      %s27 = sadd.s32 %s26, 1
      %s28 = scalar_select %p25, %s26, %s27
      %p31 = pneg %p25
      %p32 = scmp.eq.s32.totalorder %s16, 1
      %p33 = por %p31, %p32
      %p34 = scmp.ne.s32.totalorder %s26, %s29
      %p35 = scmp.eq.s32.totalorder %s16, 0
      %p36 = por %p34, %p35
      %p37 = scmp.ne.s32.totalorder %s26, %s29
      %p38 = scmp.eq.s32.totalorder %s21, 1
      %p39 = por %p37, %p38
      %p40 = scmp.ne.s32.totalorder %s29, %s30
      %p41 = scmp.eq.s32.totalorder %s21, 0
      %p42 = por %p40, %p41
      %p43 = scmp.ne.s32.totalorder %s29, %s30
      %p44 = scmp.eq.s32.totalorder %s22, 1
      %p45 = por %p43, %p44
      %p47 = scmp.ne.s32.totalorder %s30, %s46
      %p48 = scmp.eq.s32.totalorder %s22, 0
      %p49 = por %p47, %p48
      %s51 = sadd.s32 %s50, 1
      %p54 = scmp.eq.s32.totalorder %s16, 1
      %p55 = scmp.ne.s32.totalorder %s50, %s52
      %p56 = scmp.eq.s32.totalorder %s16, 0
      %p57 = por %p55, %p56
      %p58 = scmp.ne.s32.totalorder %s50, %s52
      %p59 = scmp.eq.s32.totalorder %s21, 1
      %p60 = por %p58, %p59
      %p61 = scmp.ne.s32.totalorder %s52, %s53
      %p62 = scmp.eq.s32.totalorder %s21, 0
      %p63 = por %p61, %p62
      %p64 = scmp.ne.s32.totalorder %s52, %s53
      %p65 = scmp.eq.s32.totalorder %s22, 1
      %p66 = por %p64, %p65
      %p68 = scmp.ne.s32.totalorder %s53, %s67
      %p69 = scmp.eq.s32.totalorder %s22, 0
      %p70 = por %p68, %p69
      %s72 = sadd.s32 %s71, 1
      %p75 = scmp.eq.s32.totalorder %s16, 1
      %p76 = scmp.ne.s32.totalorder %s71, %s73
      %p77 = scmp.eq.s32.totalorder %s16, 0
      %p78 = por %p76, %p77
      %p79 = scmp.ne.s32.totalorder %s71, %s73
      %p80 = scmp.eq.s32.totalorder %s21, 1
      %p81 = por %p79, %p80
      %p82 = scmp.ne.s32.totalorder %s73, %s74
      %p83 = scmp.eq.s32.totalorder %s21, 0
      %p84 = por %p82, %p83
      %p85 = scmp.ne.s32.totalorder %s73, %s74
      %p86 = scmp.eq.s32.totalorder %s22, 1
      %p87 = por %p85, %p86
      %p89 = scmp.ne.s32.totalorder %s74, %s88
      %p90 = scmp.eq.s32.totalorder %s22, 0
      %p91 = por %p89, %p90
      %s93 = sadd.s32 %s92, 1
      %p96 = scmp.eq.s32.totalorder %s16, 1
      %p97 = scmp.ne.s32.totalorder %s92, %s94
      %p98 = scmp.eq.s32.totalorder %s16, 0
      %p99 = por %p97, %p98
      %p100 = scmp.ne.s32.totalorder %s92, %s94
      %p101 = scmp.eq.s32.totalorder %s21, 1
      %p102 = por %p100, %p101
      %p103 = scmp.ne.s32.totalorder %s94, %s95
      %p104 = scmp.eq.s32.totalorder %s21, 0
      %p105 = por %p103, %p104
      %p106 = scmp.ne.s32.totalorder %s94, %s95
      %p107 = scmp.eq.s32.totalorder %s22, 1
      %p108 = por %p106, %p107
      %p110 = scmp.ne.s32.totalorder %s95, %s109
      %p111 = scmp.eq.s32.totalorder %s22, 0
      %p112 = por %p110, %p111
      %s114 = sadd.s32 %s113, 1
      %p117 = scmp.eq.s32.totalorder %s16, 1
      %p118 = scmp.ne.s32.totalorder %s113, %s115
      %p119 = scmp.eq.s32.totalorder %s16, 0
      %p120 = por %p118, %p119
      %p121 = scmp.ne.s32.totalorder %s113, %s115
      %p122 = scmp.eq.s32.totalorder %s21, 1
      %p123 = por %p121, %p122
      %p124 = scmp.ne.s32.totalorder %s115, %s116
      %p125 = scmp.eq.s32.totalorder %s21, 0
      %p126 = por %p124, %p125
      %p127 = scmp.ne.s32.totalorder %s115, %s116
      %p128 = scmp.eq.s32.totalorder %s22, 1
      %p129 = por %p127, %p128
      %p131 = scmp.ne.s32.totalorder %s116, %s130
      %p132 = scmp.eq.s32.totalorder %s22, 0
      %p133 = por %p131, %p132
      %s135 = sadd.s32 %s134, 1
      %p138 = scmp.eq.s32.totalorder %s16, 1
      %p139 = scmp.ne.s32.totalorder %s134, %s136
      %p140 = scmp.eq.s32.totalorder %s16, 0
      %p141 = por %p139, %p140
      %p142 = scmp.ne.s32.totalorder %s134, %s136
      %p143 = scmp.eq.s32.totalorder %s21, 1
      %p144 = por %p142, %p143
      %p145 = scmp.ne.s32.totalorder %s136, %s137
      %p146 = scmp.eq.s32.totalorder %s21, 0
      %p147 = por %p145, %p146
      %p148 = scmp.ne.s32.totalorder %s136, %s137
      %p149 = scmp.eq.s32.totalorder %s22, 1
      %p150 = por %p148, %p149
      %p152 = scmp.ne.s32.totalorder %s137, %s151
      %p153 = scmp.eq.s32.totalorder %s22, 0
      %p154 = por %p152, %p153
      %s156 = sadd.s32 %s155, 1
      %p159 = scmp.eq.s32.totalorder %s16, 1
      %p160 = scmp.ne.s32.totalorder %s155, %s157
      %p161 = scmp.eq.s32.totalorder %s16, 0
      %p162 = por %p160, %p161
      %p163 = scmp.ne.s32.totalorder %s155, %s157
      %p164 = scmp.eq.s32.totalorder %s21, 1
      %p165 = por %p163, %p164
      %p166 = scmp.ne.s32.totalorder %s157, %s158
      %p167 = scmp.eq.s32.totalorder %s21, 0
      %p168 = por %p166, %p167
      %p169 = scmp.ne.s32.totalorder %s157, %s158
      %p170 = scmp.eq.s32.totalorder %s22, 1
      %p171 = por %p169, %p170
      %p173 = scmp.ne.s32.totalorder %s158, %s172
      %p174 = scmp.eq.s32.totalorder %s22, 0
      %p175 = por %p173, %p174
      %s176 = ssub.s32 %s16, %s23
      %p177 = scmp.eq.s32.totalorder %s176, 0
      %s179 = sadd.s32 %s178, 1
      %s180 = scalar_select %p177, %s178, %s179
      %p183 = pneg %p177
      %p184 = scmp.eq.s32.totalorder %s16, 1
      %p185 = por %p183, %p184
      %p186 = scmp.ne.s32.totalorder %s178, %s181
      %p187 = scmp.eq.s32.totalorder %s16, 0
      %p188 = por %p186, %p187
      %p189 = scmp.ne.s32.totalorder %s178, %s181
      %p190 = scmp.eq.s32.totalorder %s21, 1
      %p191 = por %p189, %p190
      %p192 = scmp.ne.s32.totalorder %s181, %s182
      %p193 = scmp.eq.s32.totalorder %s21, 0
      %p194 = por %p192, %p193
      %p195 = scmp.ne.s32.totalorder %s181, %s182
      %p196 = scmp.eq.s32.totalorder %s22, 1
      %p197 = por %p195, %p196
      %p199 = scmp.ne.s32.totalorder %s182, %s198
      %p200 = scmp.eq.s32.totalorder %s22, 0
      %p201 = por %p199, %p200
      %p202 = scmp.le.s32.totalorder 1, %s16
      %p203 = scmp.lt.s32.totalorder %s16, 3
      %p204 = pnand %p202, %p203
      %p205 = pneg %p204
      // Predicated region
      $region9: #{pinnkan_forward.1} parent=5 // pred_check
        _
      $region10: #{pinnkan_forward.1} parent=5 // pred_check_branch
        %207 = sbr.rel (%p204) target = $region12
      $region11: #{pinnkan_forward.1} parent=5 // pred_region
        %s208 = ssub.s32 %s16, 1
        // Predicated region
        $region13: #{pinnkan_forward.1} parent=11 // pred_check
          %p209 = pneg %p63
        $region14: #{pinnkan_forward.1} parent=11 // pred_check_branch
          %211 = sbr.rel (%p209) target = $region16
        $region15: #{pinnkan_forward.1} parent=11 // pred_region
          _
        $region16: #{pinnkan_forward.1} parent=11 // pred_fallthru
          _
        // Predicated region
        $region17: #{pinnkan_forward.1} parent=11 // pred_check
          %p212 = pneg %p84
        $region18: #{pinnkan_forward.1} parent=11 // pred_check_branch
          %214 = sbr.rel (%p212) target = $region20
        $region19: #{pinnkan_forward.1} parent=11 // pred_region
          _
        $region20: #{pinnkan_forward.1} parent=11 // pred_fallthru
          _
        // Predicated region
        $region21: #{pinnkan_forward.1} parent=11 // pred_check
          %p215 = pneg %p105
        $region22: #{pinnkan_forward.1} parent=11 // pred_check_branch
          %217 = sbr.rel (%p215) target = $region24
        $region23: #{pinnkan_forward.1} parent=11 // pred_region
          _
        $region24: #{pinnkan_forward.1} parent=11 // pred_fallthru
          _
        // Predicated region
        $region25: #{pinnkan_forward.1} parent=11 // pred_check
          %p218 = pneg %p126
        $region26: #{pinnkan_forward.1} parent=11 // pred_check_branch
          %220 = sbr.rel (%p218) target = $region28
        $region27: #{pinnkan_forward.1} parent=11 // pred_region
          _
        $region28: #{pinnkan_forward.1} parent=11 // pred_fallthru
          _
        // Predicated region
        $region29: #{pinnkan_forward.1} parent=11 // pred_check
          %p221 = pneg %p147
        $region30: #{pinnkan_forward.1} parent=11 // pred_check_branch
          %223 = sbr.rel (%p221) target = $region32
        $region31: #{pinnkan_forward.1} parent=11 // pred_region
          _
        $region32: #{pinnkan_forward.1} parent=11 // pred_fallthru
          _
        // Predicated region
        $region33: #{pinnkan_forward.1} parent=11 // pred_check
          %p224 = pneg %p168
        $region34: #{pinnkan_forward.1} parent=11 // pred_check_branch
          %226 = sbr.rel (%p224) target = $region36
        $region35: #{pinnkan_forward.1} parent=11 // pred_region
          _
        $region36: #{pinnkan_forward.1} parent=11 // pred_fallthru
          _
      $region12: #{pinnkan_forward.1} parent=5 // pred_fallthru
        _
      %p227 = scmp.lt.s32.totalorder %s16, 2
      // Predicated region
      $region37: #{pinnkan_forward.1} parent=5 // pred_check
        %p228 = pneg %p227
      $region38: #{pinnkan_forward.1} parent=5 // pred_check_branch
        %230 = sbr.rel (%p228) target = $region40
      $region39: #{pinnkan_forward.1} parent=5 // pred_region
        // Predicated region
        $region41: #{pinnkan_forward.1} parent=39 // pred_check
          %p231 = pneg %p36
        $region42: #{pinnkan_forward.1} parent=39 // pred_check_branch
          %233 = sbr.rel (%p231) target = $region44
        $region43: #{pinnkan_forward.1} parent=39 // pred_region
          %p234 = scmp.lt.s32.totalorder %s16, 1
          %s235 = scalar_select %p234, %s16, 1
          %s236 = smul.addr %s235, 4
          %s237 = scalar_lea.vmem %s0, %s236
        $region44: #{pinnkan_forward.1} parent=39 // pred_fallthru
          _
      $region40: #{pinnkan_forward.1} parent=5 // pred_fallthru
        _
      %p238 = scmp.le.s32.totalorder 1, %s16
      %p239 = scmp.lt.s32.totalorder %s16, 3
      %p240 = pnand %p238, %p239
      %p241 = pneg %p240
      // Predicated region
      $region45: #{pinnkan_forward.1} parent=5 // pred_check
        _
      $region46: #{pinnkan_forward.1} parent=5 // pred_check_branch
        %243 = sbr.rel (%p240) target = $region48
      $region47: #{pinnkan_forward.1} parent=5 // pred_region
        %s244 = ssub.s32 %s16, 1
        %p245 = scmp.lt.s32.totalorder %s21, 1
        %s246 = scalar_select %p245, %s21, 1
        %s247 = smul.addr %s246, 4
        %s248 = scalar_lea.vmem %s0, %s247
        %p249 = pneg %p42
        %p250 = pneg %p39
        %p251 = pneg %p63
        %p252 = pneg %p60
        %p253 = pneg %p84
        %p254 = pneg %p81
        %p255 = pneg %p105
        %p256 = pneg %p102
        %p257 = pneg %p126
        %p258 = pneg %p123
        %p259 = pneg %p147
        %p260 = pneg %p144
        %p261 = pneg %p168
        %p262 = pneg %p165
        %p263 = pneg %p194
        %p264 = pneg %p191
        %s265 = sand.u32 %s181, 1
        %s266 = scalar_lea.sflag [#allocation3], %s265
        %s267 = sand.u32 %s181, 1
        %s268 = smul.addr %s267, 2
        %s269 = scalar_lea.vmem [#allocation2], %s268
        %p270 = scmp.lt.s32.totalorder %s21, 1
        %s271 = scalar_select %p270, %s21, 1
        %s272 = smul.addr %s271, 4
        %s273 = scalar_lea.vmem %s0, %s272
        %v274 = vld [vmem:[%s273] sm:$0xf]
        %v275 = vld [vmem:[%s2] sm:$0xff]
        %v276 = vld [vmem:[%s2 + $0x8] sm:$0xff]
        %v277 = vld [vmem:[%s2 + $0x10] sm:$0xff]
        %v278 = vld [vmem:[%s2 + $0x18] sm:$0xff]
        %v279 = vtanh.pop %v274
        %v280 = vmul.f32 %v279, 2.0
        %v281 = vadd.f32 %v280, 0.0
        %v282 = vld [vmem:[%s1] sm:$0xff]
        %v283 = vld [vmem:[%s1 + $0x8] sm:$0xff]
        %v284 = vld [vmem:[%s1 + $0x10] sm:$0xff]
        %v285 = vld [vmem:[%s1 + $0x18] sm:$0xff]
        %287 = vset.pattern.permute.xlu0 0
        %288 = vperm.xlu0 %287, %v275
        %v289 = vpop.permute.xlu0 %288
        %292 = vset.pattern.permute.xlu0 0
        %293 = vperm.xlu0 %292, %v276
        %v294 = vpop.permute.xlu0 %293
        %297 = vset.pattern.permute.xlu0 0
        %298 = vperm.xlu0 %297, %v277
        %v299 = vpop.permute.xlu0 %298
        %302 = vset.pattern.permute.xlu0 0
        %303 = vperm.xlu0 %302, %v278
        %v304 = vpop.permute.xlu0 %303
        %vm306 = vcmask 31744
        %v308 = vsel %vm306, %v282, 0
        %v311 = vsel %vm306, %v283, 0
        %v314 = vsel %vm306, %v284, 0
        %v317 = vsel %vm306, %v285, 0
        %vm319 = vcmask 1043456
        %v321 = vsel %vm319, %v281, 0
        %323 = vmatprep.subr.mxu0 0.0
        %324 = vmatpush1.msra.mxu0 %v321
        %325 = vmatprep.subr.mxu0 0.0
        %326 = vmatpush1.msra.mxu0 0.0
        %327 = vmatprep.subr.mxu0 0.0
        %328 = vmatpush1.msra.mxu0 0.0
        %329 = vmatprep.subr.mxu0 0.0
        %330 = vmatpush1.msra.mxu0 0.0
        %331 = vmatprep.subr.mxu0 0.0
        %332 = vmatpush1.msra.mxu0 0.0
        %333 = vmatprep.subr.mxu0 0.0
        %334 = vmatpush1.msra.mxu0 0.0
        %335 = vmatprep.subr.mxu0 0.0
        %336 = vmatpush1.msra.mxu0 0.0
        %337 = vmatprep.subr.mxu0 0.0
        %338 = vmatpush1.msra.mxu0 0.0
        %339 = vmatprep.subr.mxu0 0.0
        %340 = vmatpush1.msra.mxu0 0.0
        %341 = vmatprep.subr.mxu0 0.0
        %342 = vmatpush1.msra.mxu0 0.0
        %343 = vmatprep.subr.mxu0 0.0
        %344 = vmatpush1.msra.mxu0 0.0
        %345 = vmatprep.subr.mxu0 0.0
        %346 = vmatpush1.msra.mxu0 0.0
        %347 = vmatprep.subr.mxu0 0.0
        %348 = vmatpush1.msra.mxu0 0.0
        %349 = vmatprep.subr.mxu0 0.0
        %350 = vmatpush1.msra.mxu0 0.0
        %351 = vmatprep.subr.mxu0 0.0
        %352 = vmatpush1.msra.mxu0 0.0
        %353 = vmatprep.subr.mxu0 0.0
        %354 = vmatpush1.msra.mxu0 0.0
        %355 = vmatprep.subr.mxu0 0.0
        %356 = vmatpush1.msra.mxu0 0.0
        %357 = vmatprep.subr.mxu0 0.0
        %358 = vmatpush1.msra.mxu0 0.0
        %359 = vmatprep.subr.mxu0 0.0
        %360 = vmatpush1.msra.mxu0 0.0
        %361 = vmatprep.subr.mxu0 0.0
        %362 = vmatpush1.msra.mxu0 0.0
        %363 = vmatprep.subr.mxu0 0.0
        %364 = vmatpush1.msra.mxu0 0.0
        %365 = vmatprep.subr.mxu0 0.0
        %366 = vmatpush1.msra.mxu0 0.0
        %367 = vmatprep.subr.mxu0 0.0
        %368 = vmatpush1.msra.mxu0 0.0
        %369 = vmatprep.subr.mxu0 0.0
        %370 = vmatpush1.msra.mxu0 0.0
        %371 = vmatprep.subr.mxu0 0.0
        %372 = vmatpush1.msra.mxu0 0.0
        %373 = vmatprep.subr.mxu0 0.0
        %374 = vmatpush1.msra.mxu0 0.0
        %375 = vmatprep.subr.mxu0 0.0
        %376 = vmatpush1.msra.mxu0 0.0
        %377 = vmatprep.subr.mxu0 0.0
        %378 = vmatpush1.msra.mxu0 0.0
        %379 = vmatprep.subr.mxu0 0.0
        %380 = vmatpush1.msra.mxu0 0.0
        %381 = vmatprep.subr.mxu0 0.0
        %382 = vmatpush1.msra.mxu0 0.0
        %383 = vmatprep.subr.mxu0 0.0
        %384 = vmatpush1.msra.mxu0 0.0
        %385 = vmatprep.subr.mxu0 0.0
        %386 = vmatpush1.msra.mxu0 0.0
        %387 = vmatprep.mubr.f32.mxu0 0.0
        %388 = vmatmul.mubr.f32.gmra.mrb[0].mxu0 %v308
        %v389 = vpop.f32.mrb[0].mxu0
        %v390 = vadd.f32 %v289, %v389
        %v391 = vpop.f32.mrb[0].mxu0
        %392 = vmatprep.mubr.f32.mxu0 0.0
        %393 = vmatmul.mubr.f32.gmra.mrb[0].mxu0 %v311
        %v394 = vpop.f32.mrb[0].mxu0
        %v395 = vadd.f32 %v294, %v394
        %v396 = vpop.f32.mrb[0].mxu0
        %397 = vmatprep.mubr.f32.mxu0 0.0
        %398 = vmatmul.mubr.f32.gmra.mrb[0].mxu0 %v314
        %v399 = vpop.f32.mrb[0].mxu0
        %v400 = vadd.f32 %v299, %v399
        %v401 = vpop.f32.mrb[0].mxu0
        %402 = vmatprep.mubr.f32.mxu0 0.0
        %403 = vmatmul.mubr.f32.gmra.mrb[0].mxu0 %v317
        %v404 = vpop.f32.mrb[0].mxu0
        %v405 = vadd.f32 %v304, %v404
        %v406 = vpop.f32.mrb[0].mxu0
        %407 = vdwg.mxu0
        %v408 = vmul.f32 %v279, 1.875
        %v409 = vmul.f32 %v408, %v281
        %v410 = vsub.f32 %v409, 1.125
        %s411 = scalar_lea.vmem %s1, 32
        %v412 = vld [vmem:[%s411] sm:$0xff]
        %v413 = vld [vmem:[%s411 + $0x8] sm:$0xff]
        %v414 = vld [vmem:[%s411 + $0x10] sm:$0xff]
        %v415 = vld [vmem:[%s411 + $0x18] sm:$0xff]
        %v417 = vsel %vm306, %v412, 0
        %v420 = vsel %vm306, %v413, 0
        %v423 = vsel %vm306, %v414, 0
        %v426 = vsel %vm306, %v415, 0
        %v429 = vsel %vm319, %v410, 0
        %431 = vmatprep.subr.mxu0 0.0
        %432 = vmatpush1.msra.mxu0 %v429
        %433 = vmatprep.subr.mxu0 0.0
        %434 = vmatpush1.msra.mxu0 0.0
        %435 = vmatprep.subr.mxu0 0.0
        %436 = vmatpush1.msra.mxu0 0.0
        %437 = vmatprep.subr.mxu0 0.0
        %438 = vmatpush1.msra.mxu0 0.0
        %439 = vmatprep.subr.mxu0 0.0
        %440 = vmatpush1.msra.mxu0 0.0
        %441 = vmatprep.subr.mxu0 0.0
        %442 = vmatpush1.msra.mxu0 0.0
        %443 = vmatprep.subr.mxu0 0.0
        %444 = vmatpush1.msra.mxu0 0.0
        %445 = vmatprep.subr.mxu0 0.0
        %446 = vmatpush1.msra.mxu0 0.0
        %447 = vmatprep.subr.mxu0 0.0
        %448 = vmatpush1.msra.mxu0 0.0
        %449 = vmatprep.subr.mxu0 0.0
        %450 = vmatpush1.msra.mxu0 0.0
        %451 = vmatprep.subr.mxu0 0.0
        %452 = vmatpush1.msra.mxu0 0.0
        %453 = vmatprep.subr.mxu0 0.0
        %454 = vmatpush1.msra.mxu0 0.0
        %455 = vmatprep.subr.mxu0 0.0
        %456 = vmatpush1.msra.mxu0 0.0
        %457 = vmatprep.subr.mxu0 0.0
        %458 = vmatpush1.msra.mxu0 0.0
        %459 = vmatprep.subr.mxu0 0.0
        %460 = vmatpush1.msra.mxu0 0.0
        %461 = vmatprep.subr.mxu0 0.0
        %462 = vmatpush1.msra.mxu0 0.0
        %463 = vmatprep.subr.mxu0 0.0
        %464 = vmatpush1.msra.mxu0 0.0
        %465 = vmatprep.subr.mxu0 0.0
        %466 = vmatpush1.msra.mxu0 0.0
        %467 = vmatprep.subr.mxu0 0.0
        %468 = vmatpush1.msra.mxu0 0.0
        %469 = vmatprep.subr.mxu0 0.0
        %470 = vmatpush1.msra.mxu0 0.0
        %471 = vmatprep.subr.mxu0 0.0
        %472 = vmatpush1.msra.mxu0 0.0
        %473 = vmatprep.subr.mxu0 0.0
        %474 = vmatpush1.msra.mxu0 0.0
        %475 = vmatprep.subr.mxu0 0.0
        %476 = vmatpush1.msra.mxu0 0.0
        %477 = vmatprep.subr.mxu0 0.0
        %478 = vmatpush1.msra.mxu0 0.0
        %479 = vmatprep.subr.mxu0 0.0
        %480 = vmatpush1.msra.mxu0 0.0
        %481 = vmatprep.subr.mxu0 0.0
        %482 = vmatpush1.msra.mxu0 0.0
        %483 = vmatprep.subr.mxu0 0.0
        %484 = vmatpush1.msra.mxu0 0.0
        %485 = vmatprep.subr.mxu0 0.0
        %486 = vmatpush1.msra.mxu0 0.0
        %487 = vmatprep.subr.mxu0 0.0
        %488 = vmatpush1.msra.mxu0 0.0
        %489 = vmatprep.subr.mxu0 0.0
        %490 = vmatpush1.msra.mxu0 0.0
        %491 = vmatprep.subr.mxu0 0.0
        %492 = vmatpush1.msra.mxu0 0.0
        %493 = vmatprep.subr.mxu0 0.0
        %494 = vmatpush1.msra.mxu0 0.0
        %495 = vmatprep.mubr.f32.mxu0 0.0
        %496 = vmatmul.mubr.f32.gmra.mrb[0].mxu0 %v417
        %v497 = vpop.f32.mrb[0].mxu0
        %v498 = vadd.f32 0.0, %v497
        %v499 = vpop.f32.mrb[0].mxu0
        %500 = vmatprep.mubr.f32.mxu0 0.0
        %501 = vmatmul.mubr.f32.gmra.mrb[0].mxu0 %v420
        %v502 = vpop.f32.mrb[0].mxu0
        %v503 = vadd.f32 0.0, %v502
        %v504 = vpop.f32.mrb[0].mxu0
        %505 = vmatprep.mubr.f32.mxu0 0.0
        %506 = vmatmul.mubr.f32.gmra.mrb[0].mxu0 %v423
        %v507 = vpop.f32.mrb[0].mxu0
        %v508 = vadd.f32 0.0, %v507
        %v509 = vpop.f32.mrb[0].mxu0
        %510 = vmatprep.mubr.f32.mxu0 0.0
        %511 = vmatmul.mubr.f32.gmra.mrb[0].mxu0 %v426
        %v512 = vpop.f32.mrb[0].mxu0
        %v513 = vadd.f32 0.0, %v512
        %v514 = vpop.f32.mrb[0].mxu0
        %515 = vdwg.mxu0
        %v516 = vadd.f32 %v390, %v498
        %v517 = vadd.f32 %v395, %v503
        %v518 = vadd.f32 %v400, %v508
        %v519 = vadd.f32 %v405, %v513
        %v520 = vmul.f32 %v279, 1.8666667
        %v521 = vmul.f32 %v520, %v410
        %v522 = vmul.f32 %v281, 1.6
        %v523 = vsub.f32 %v521, %v522
        %s524 = scalar_lea.vmem %s1, 64
        %v525 = vld [vmem:[%s524] sm:$0xff]
        %v526 = vld [vmem:[%s524 + $0x8] sm:$0xff]
        %v527 = vld [vmem:[%s524 + $0x10] sm:$0xff]
        %v528 = vld [vmem:[%s524 + $0x18] sm:$0xff]
        %v530 = vsel %vm306, %v525, 0
        %v533 = vsel %vm306, %v526, 0
        %v536 = vsel %vm306, %v527, 0
        %v539 = vsel %vm306, %v528, 0
        %v542 = vsel %vm319, %v523, 0
        %544 = vmatprep.subr.mxu0 0.0
        %545 = vmatpush1.msra.mxu0 %v542
        %546 = vmatprep.subr.mxu0 0.0
        %547 = vmatpush1.msra.mxu0 0.0
        %548 = vmatprep.subr.mxu0 0.0
        %549 = vmatpush1.msra.mxu0 0.0
        %550 = vmatprep.subr.mxu0 0.0
        %551 = vmatpush1.msra.mxu0 0.0
        %552 = vmatprep.subr.mxu0 0.0
        %553 = vmatpush1.msra.mxu0 0.0
        %554 = vmatprep.subr.mxu0 0.0
        %555 = vmatpush1.msra.mxu0 0.0
        %556 = vmatprep.subr.mxu0 0.0
        %557 = vmatpush1.msra.mxu0 0.0
        %558 = vmatprep.subr.mxu0 0.0
        %559 = vmatpush1.msra.mxu0 0.0
        %560 = vmatprep.subr.mxu0 0.0
        %561 = vmatpush1.msra.mxu0 0.0
        %562 = vmatprep.subr.mxu0 0.0
        %563 = vmatpush1.msra.mxu0 0.0
        %564 = vmatprep.subr.mxu0 0.0
        %565 = vmatpush1.msra.mxu0 0.0
        %566 = vmatprep.subr.mxu0 0.0
        %567 = vmatpush1.msra.mxu0 0.0
        %568 = vmatprep.subr.mxu0 0.0
        %569 = vmatpush1.msra.mxu0 0.0
        %570 = vmatprep.subr.mxu0 0.0
        %571 = vmatpush1.msra.mxu0 0.0
        %572 = vmatprep.subr.mxu0 0.0
        %573 = vmatpush1.msra.mxu0 0.0
        %574 = vmatprep.subr.mxu0 0.0
        %575 = vmatpush1.msra.mxu0 0.0
        %576 = vmatprep.subr.mxu0 0.0
        %577 = vmatpush1.msra.mxu0 0.0
        %578 = vmatprep.subr.mxu0 0.0
        %579 = vmatpush1.msra.mxu0 0.0
        %580 = vmatprep.subr.mxu0 0.0
        %581 = vmatpush1.msra.mxu0 0.0
        %582 = vmatprep.subr.mxu0 0.0
        %583 = vmatpush1.msra.mxu0 0.0
        %584 = vmatprep.subr.mxu0 0.0
        %585 = vmatpush1.msra.mxu0 0.0
        %586 = vmatprep.subr.mxu0 0.0
        %587 = vmatpush1.msra.mxu0 0.0
        %588 = vmatprep.subr.mxu0 0.0
        %589 = vmatpush1.msra.mxu0 0.0
        %590 = vmatprep.subr.mxu0 0.0
        %591 = vmatpush1.msra.mxu0 0.0
        %592 = vmatprep.subr.mxu0 0.0
        %593 = vmatpush1.msra.mxu0 0.0
        %594 = vmatprep.subr.mxu0 0.0
        %595 = vmatpush1.msra.mxu0 0.0
        %596 = vmatprep.subr.mxu0 0.0
        %597 = vmatpush1.msra.mxu0 0.0
        %598 = vmatprep.subr.mxu0 0.0
        %599 = vmatpush1.msra.mxu0 0.0
        %600 = vmatprep.subr.mxu0 0.0
        %601 = vmatpush1.msra.mxu0 0.0
        %602 = vmatprep.subr.mxu0 0.0
        %603 = vmatpush1.msra.mxu0 0.0
        %604 = vmatprep.subr.mxu0 0.0
        %605 = vmatpush1.msra.mxu0 0.0
        %606 = vmatprep.subr.mxu0 0.0
        %607 = vmatpush1.msra.mxu0 0.0
        %608 = vmatprep.mubr.f32.mxu0 0.0
        %609 = vmatmul.mubr.f32.gmra.mrb[0].mxu0 %v530
        %v610 = vpop.f32.mrb[0].mxu0
        %v611 = vadd.f32 0.0, %v610
        %v612 = vpop.f32.mrb[0].mxu0
        %613 = vmatprep.mubr.f32.mxu0 0.0
        %614 = vmatmul.mubr.f32.gmra.mrb[0].mxu0 %v533
        %v615 = vpop.f32.mrb[0].mxu0
        %v616 = vadd.f32 0.0, %v615
        %v617 = vpop.f32.mrb[0].mxu0
        %618 = vmatprep.mubr.f32.mxu0 0.0
        %619 = vmatmul.mubr.f32.gmra.mrb[0].mxu0 %v536
        %v620 = vpop.f32.mrb[0].mxu0
        %v621 = vadd.f32 0.0, %v620
        %v622 = vpop.f32.mrb[0].mxu0
        %623 = vmatprep.mubr.f32.mxu0 0.0
        %624 = vmatmul.mubr.f32.gmra.mrb[0].mxu0 %v539
        %v625 = vpop.f32.mrb[0].mxu0
        %v626 = vadd.f32 0.0, %v625
        %v627 = vpop.f32.mrb[0].mxu0
        %628 = vdwg.mxu0
        %v629 = vadd.f32 %v516, %v611
        %v630 = vadd.f32 %v517, %v616
        %v631 = vadd.f32 %v518, %v621
        %v632 = vadd.f32 %v519, %v626
        %v633 = vmul.f32 %v408, %v523
        %v634 = vmul.f32 %v410, 2.0833333
        %v635 = vsub.f32 %v633, %v634
        %s636 = scalar_lea.vmem %s1, 96
        %v637 = vld [vmem:[%s636] sm:$0xff]
        %v638 = vld [vmem:[%s636 + $0x8] sm:$0xff]
        %v639 = vld [vmem:[%s636 + $0x10] sm:$0xff]
        %v640 = vld [vmem:[%s636 + $0x18] sm:$0xff]
        %v642 = vsel %vm306, %v637, 0
        %v645 = vsel %vm306, %v638, 0
        %v648 = vsel %vm306, %v639, 0
        %v651 = vsel %vm306, %v640, 0
        %v654 = vsel %vm319, %v635, 0
        %656 = vmatprep.subr.mxu0 0.0
        %657 = vmatpush1.msra.mxu0 %v654
        %658 = vmatprep.subr.mxu0 0.0
        %659 = vmatpush1.msra.mxu0 0.0
        %660 = vmatprep.subr.mxu0 0.0
        %661 = vmatpush1.msra.mxu0 0.0
        %662 = vmatprep.subr.mxu0 0.0
        %663 = vmatpush1.msra.mxu0 0.0
        %664 = vmatprep.subr.mxu0 0.0
        %665 = vmatpush1.msra.mxu0 0.0
        %666 = vmatprep.subr.mxu0 0.0
        %667 = vmatpush1.msra.mxu0 0.0
        %668 = vmatprep.subr.mxu0 0.0
        %669 = vmatpush1.msra.mxu0 0.0
        %670 = vmatprep.subr.mxu0 0.0
        %671 = vmatpush1.msra.mxu0 0.0
        %672 = vmatprep.subr.mxu0 0.0
        %673 = vmatpush1.msra.mxu0 0.0
        %674 = vmatprep.subr.mxu0 0.0
        %675 = vmatpush1.msra.mxu0 0.0
        %676 = vmatprep.subr.mxu0 0.0
        %677 = vmatpush1.msra.mxu0 0.0
        %678 = vmatprep.subr.mxu0 0.0
        %679 = vmatpush1.msra.mxu0 0.0
        %680 = vmatprep.subr.mxu0 0.0
        %681 = vmatpush1.msra.mxu0 0.0
        %682 = vmatprep.subr.mxu0 0.0
        %683 = vmatpush1.msra.mxu0 0.0
        %684 = vmatprep.subr.mxu0 0.0
        %685 = vmatpush1.msra.mxu0 0.0
        %686 = vmatprep.subr.mxu0 0.0
        %687 = vmatpush1.msra.mxu0 0.0
        %688 = vmatprep.subr.mxu0 0.0
        %689 = vmatpush1.msra.mxu0 0.0
        %690 = vmatprep.subr.mxu0 0.0
        %691 = vmatpush1.msra.mxu0 0.0
        %692 = vmatprep.subr.mxu0 0.0
        %693 = vmatpush1.msra.mxu0 0.0
        %694 = vmatprep.subr.mxu0 0.0
        %695 = vmatpush1.msra.mxu0 0.0
        %696 = vmatprep.subr.mxu0 0.0
        %697 = vmatpush1.msra.mxu0 0.0
        %698 = vmatprep.subr.mxu0 0.0
        %699 = vmatpush1.msra.mxu0 0.0
        %700 = vmatprep.subr.mxu0 0.0
        %701 = vmatpush1.msra.mxu0 0.0
        %702 = vmatprep.subr.mxu0 0.0
        %703 = vmatpush1.msra.mxu0 0.0
        %704 = vmatprep.subr.mxu0 0.0
        %705 = vmatpush1.msra.mxu0 0.0
        %706 = vmatprep.subr.mxu0 0.0
        %707 = vmatpush1.msra.mxu0 0.0
        %708 = vmatprep.subr.mxu0 0.0
        %709 = vmatpush1.msra.mxu0 0.0
        %710 = vmatprep.subr.mxu0 0.0
        %711 = vmatpush1.msra.mxu0 0.0
        %712 = vmatprep.subr.mxu0 0.0
        %713 = vmatpush1.msra.mxu0 0.0
        %714 = vmatprep.subr.mxu0 0.0
        %715 = vmatpush1.msra.mxu0 0.0
        %716 = vmatprep.subr.mxu0 0.0
        %717 = vmatpush1.msra.mxu0 0.0
        %718 = vmatprep.subr.mxu0 0.0
        %719 = vmatpush1.msra.mxu0 0.0
        %720 = vmatprep.mubr.f32.mxu0 0.0
        %721 = vmatmul.mubr.f32.gmra.mrb[0].mxu0 %v642
        %v722 = vpop.f32.mrb[0].mxu0
        %v723 = vadd.f32 0.0, %v722
        %v724 = vpop.f32.mrb[0].mxu0
        %725 = vmatprep.mubr.f32.mxu0 0.0
        %726 = vmatmul.mubr.f32.gmra.mrb[0].mxu0 %v645
        %v727 = vpop.f32.mrb[0].mxu0
        %v728 = vadd.f32 0.0, %v727
        %v729 = vpop.f32.mrb[0].mxu0
        %730 = vmatprep.mubr.f32.mxu0 0.0
        %731 = vmatmul.mubr.f32.gmra.mrb[0].mxu0 %v648
        %v732 = vpop.f32.mrb[0].mxu0
        %v733 = vadd.f32 0.0, %v732
        %v734 = vpop.f32.mrb[0].mxu0
        %735 = vmatprep.mubr.f32.mxu0 0.0
        %736 = vmatmul.mubr.f32.gmra.mrb[0].mxu0 %v651
        %v737 = vpop.f32.mrb[0].mxu0
        %v738 = vadd.f32 0.0, %v737
        %v739 = vpop.f32.mrb[0].mxu0
        %740 = vdwg.mxu0
        %v741 = vadd.f32 %v629, %v723
        %v742 = vadd.f32 %v630, %v728
        %v743 = vadd.f32 %v631, %v733
        %v744 = vadd.f32 %v632, %v738
        %v745 = vld [vmem:[%s4] sm:$0xff]
        %v746 = vld [vmem:[%s4 + $0x8] sm:$0xff]
        %v747 = vtanh.pop %v741
        %v748 = vtanh.pop %v742
        %v749 = vtanh.pop %v743
        %v750 = vtanh.pop %v744
        %v751 = vmul.f32 %v747, 2.0
        %v752 = vmul.f32 %v748, 2.0
        %v753 = vmul.f32 %v749, 2.0
        %v754 = vmul.f32 %v750, 2.0
        %v755 = vadd.f32 %v751, 0.0
        %v756 = vadd.f32 %v752, 0.0
        %v757 = vadd.f32 %v753, 0.0
        %v758 = vadd.f32 %v754, 0.0
        %v759 = vld [vmem:[%s3] sm:$0xff]
        %v760 = vld [vmem:[%s3 + $0x8] sm:$0xff]
        %762 = vset.pattern.permute.xlu0 0
        %763 = vperm.xlu0 %762, %v745
        %v764 = vpop.permute.xlu0 %763
        %767 = vset.pattern.permute.xlu0 0
        %768 = vperm.xlu0 %767, %v746
        %v769 = vpop.permute.xlu0 %768
        %vm771 = vcmask 261120
        %v773 = vsel %vm771, %v759, 0
        %v776 = vsel %vm771, %v760, 0
        %778 = vmatprep.subr.mxu0 0.0
        %779 = vmatpush1.msra.mxu0 %v755
        %780 = vmatprep.subr.mxu0 0.0
        %781 = vmatpush1.msra.mxu0 %v756
        %782 = vmatprep.subr.mxu0 0.0
        %783 = vmatpush1.msra.mxu0 %v757
        %784 = vmatprep.subr.mxu0 0.0
        %785 = vmatpush1.msra.mxu0 %v758
        %786 = vmatprep.subr.mxu0 0.0
        %787 = vmatpush1.msra.mxu0 0.0
        %788 = vmatprep.subr.mxu0 0.0
        %789 = vmatpush1.msra.mxu0 0.0
        %790 = vmatprep.subr.mxu0 0.0
        %791 = vmatpush1.msra.mxu0 0.0
        %792 = vmatprep.subr.mxu0 0.0
        %793 = vmatpush1.msra.mxu0 0.0
        %794 = vmatprep.subr.mxu0 0.0
        %795 = vmatpush1.msra.mxu0 0.0
        %796 = vmatprep.subr.mxu0 0.0
        %797 = vmatpush1.msra.mxu0 0.0
        %798 = vmatprep.subr.mxu0 0.0
        %799 = vmatpush1.msra.mxu0 0.0
        %800 = vmatprep.subr.mxu0 0.0
        %801 = vmatpush1.msra.mxu0 0.0
        %802 = vmatprep.subr.mxu0 0.0
        %803 = vmatpush1.msra.mxu0 0.0
        %804 = vmatprep.subr.mxu0 0.0
        %805 = vmatpush1.msra.mxu0 0.0
        %806 = vmatprep.subr.mxu0 0.0
        %807 = vmatpush1.msra.mxu0 0.0
        %808 = vmatprep.subr.mxu0 0.0
        %809 = vmatpush1.msra.mxu0 0.0
        %810 = vmatprep.subr.mxu0 0.0
        %811 = vmatpush1.msra.mxu0 0.0
        %812 = vmatprep.subr.mxu0 0.0
        %813 = vmatpush1.msra.mxu0 0.0
        %814 = vmatprep.subr.mxu0 0.0
        %815 = vmatpush1.msra.mxu0 0.0
        %816 = vmatprep.subr.mxu0 0.0
        %817 = vmatpush1.msra.mxu0 0.0
        %818 = vmatprep.subr.mxu0 0.0
        %819 = vmatpush1.msra.mxu0 0.0
        %820 = vmatprep.subr.mxu0 0.0
        %821 = vmatpush1.msra.mxu0 0.0
        %822 = vmatprep.subr.mxu0 0.0
        %823 = vmatpush1.msra.mxu0 0.0
        %824 = vmatprep.subr.mxu0 0.0
        %825 = vmatpush1.msra.mxu0 0.0
        %826 = vmatprep.subr.mxu0 0.0
        %827 = vmatpush1.msra.mxu0 0.0
        %828 = vmatprep.subr.mxu0 0.0
        %829 = vmatpush1.msra.mxu0 0.0
        %830 = vmatprep.subr.mxu0 0.0
        %831 = vmatpush1.msra.mxu0 0.0
        %832 = vmatprep.subr.mxu0 0.0
        %833 = vmatpush1.msra.mxu0 0.0
        %834 = vmatprep.subr.mxu0 0.0
        %835 = vmatpush1.msra.mxu0 0.0
        %836 = vmatprep.subr.mxu0 0.0
        %837 = vmatpush1.msra.mxu0 0.0
        %838 = vmatprep.subr.mxu0 0.0
        %839 = vmatpush1.msra.mxu0 0.0
        %840 = vmatprep.subr.mxu0 0.0
        %841 = vmatpush1.msra.mxu0 0.0
        %842 = vmatprep.mubr.f32.mxu0 0.0
        %843 = vmatmul.mubr.f32.gmra.mrb[0].mxu0 %v773
        %v844 = vpop.f32.mrb[0].mxu0
        %v845 = vadd.f32 %v764, %v844
        %v846 = vpop.f32.mrb[0].mxu0
        %847 = vmatprep.mubr.f32.mxu0 0.0
        %848 = vmatmul.mubr.f32.gmra.mrb[0].mxu0 %v776
        %v849 = vpop.f32.mrb[0].mxu0
        %v850 = vadd.f32 %v769, %v849
        %v851 = vpop.f32.mrb[0].mxu0
        %852 = vdwg.mxu0
        %v853 = vmul.f32 %v747, 1.875
        %v854 = vmul.f32 %v748, 1.875
        %v855 = vmul.f32 %v749, 1.875
        %v856 = vmul.f32 %v750, 1.875
        %v857 = vmul.f32 %v853, %v755
        %v858 = vmul.f32 %v854, %v756
        %v859 = vmul.f32 %v855, %v757
        %v860 = vmul.f32 %v856, %v758
        %v861 = vsub.f32 %v857, 1.125
        %v862 = vsub.f32 %v858, 1.125
        %v863 = vsub.f32 %v859, 1.125
        %v864 = vsub.f32 %v860, 1.125
        %s865 = scalar_lea.vmem %s3, 16
        %v866 = vld [vmem:[%s865] sm:$0xff]
        %v867 = vld [vmem:[%s865 + $0x8] sm:$0xff]
        %v869 = vsel %vm771, %v866, 0
        %v872 = vsel %vm771, %v867, 0
        %874 = vmatprep.subr.mxu0 0.0
        %875 = vmatpush1.msra.mxu0 %v861
        %876 = vmatprep.subr.mxu0 0.0
        %877 = vmatpush1.msra.mxu0 %v862
        %878 = vmatprep.subr.mxu0 0.0
        %879 = vmatpush1.msra.mxu0 %v863
        %880 = vmatprep.subr.mxu0 0.0
        %881 = vmatpush1.msra.mxu0 %v864
        %882 = vmatprep.subr.mxu0 0.0
        %883 = vmatpush1.msra.mxu0 0.0
        %884 = vmatprep.subr.mxu0 0.0
        %885 = vmatpush1.msra.mxu0 0.0
        %886 = vmatprep.subr.mxu0 0.0
        %887 = vmatpush1.msra.mxu0 0.0
        %888 = vmatprep.subr.mxu0 0.0
        %889 = vmatpush1.msra.mxu0 0.0
        %890 = vmatprep.subr.mxu0 0.0
        %891 = vmatpush1.msra.mxu0 0.0
        %892 = vmatprep.subr.mxu0 0.0
        %893 = vmatpush1.msra.mxu0 0.0
        %894 = vmatprep.subr.mxu0 0.0
        %895 = vmatpush1.msra.mxu0 0.0
        %896 = vmatprep.subr.mxu0 0.0
        %897 = vmatpush1.msra.mxu0 0.0
        %898 = vmatprep.subr.mxu0 0.0
        %899 = vmatpush1.msra.mxu0 0.0
        %900 = vmatprep.subr.mxu0 0.0
        %901 = vmatpush1.msra.mxu0 0.0
        %902 = vmatprep.subr.mxu0 0.0
        %903 = vmatpush1.msra.mxu0 0.0
        %904 = vmatprep.subr.mxu0 0.0
        %905 = vmatpush1.msra.mxu0 0.0
        %906 = vmatprep.subr.mxu0 0.0
        %907 = vmatpush1.msra.mxu0 0.0
        %908 = vmatprep.subr.mxu0 0.0
        %909 = vmatpush1.msra.mxu0 0.0
        %910 = vmatprep.subr.mxu0 0.0
        %911 = vmatpush1.msra.mxu0 0.0
        %912 = vmatprep.subr.mxu0 0.0
        %913 = vmatpush1.msra.mxu0 0.0
        %914 = vmatprep.subr.mxu0 0.0
        %915 = vmatpush1.msra.mxu0 0.0
        %916 = vmatprep.subr.mxu0 0.0
        %917 = vmatpush1.msra.mxu0 0.0
        %918 = vmatprep.subr.mxu0 0.0
        %919 = vmatpush1.msra.mxu0 0.0
        %920 = vmatprep.subr.mxu0 0.0
        %921 = vmatpush1.msra.mxu0 0.0
        %922 = vmatprep.subr.mxu0 0.0
        %923 = vmatpush1.msra.mxu0 0.0
        %924 = vmatprep.subr.mxu0 0.0
        %925 = vmatpush1.msra.mxu0 0.0
        %926 = vmatprep.subr.mxu0 0.0
        %927 = vmatpush1.msra.mxu0 0.0
        %928 = vmatprep.subr.mxu0 0.0
        %929 = vmatpush1.msra.mxu0 0.0
        %930 = vmatprep.subr.mxu0 0.0
        %931 = vmatpush1.msra.mxu0 0.0
        %932 = vmatprep.subr.mxu0 0.0
        %933 = vmatpush1.msra.mxu0 0.0
        %934 = vmatprep.subr.mxu0 0.0
        %935 = vmatpush1.msra.mxu0 0.0
        %936 = vmatprep.subr.mxu0 0.0
        %937 = vmatpush1.msra.mxu0 0.0
        %938 = vmatprep.mubr.f32.mxu0 0.0
        %939 = vmatmul.mubr.f32.gmra.mrb[0].mxu0 %v869
        %v940 = vpop.f32.mrb[0].mxu0
        %v941 = vadd.f32 0.0, %v940
        %v942 = vpop.f32.mrb[0].mxu0
        %943 = vmatprep.mubr.f32.mxu0 0.0
        %944 = vmatmul.mubr.f32.gmra.mrb[0].mxu0 %v872
        %v945 = vpop.f32.mrb[0].mxu0
        %v946 = vadd.f32 0.0, %v945
        %v947 = vpop.f32.mrb[0].mxu0
        %948 = vdwg.mxu0
        %v949 = vadd.f32 %v845, %v941
        %v950 = vadd.f32 %v850, %v946
        %v951 = vmul.f32 %v747, 1.8666667
        %v952 = vmul.f32 %v748, 1.8666667
        %v953 = vmul.f32 %v749, 1.8666667
        %v954 = vmul.f32 %v750, 1.8666667
        %v955 = vmul.f32 %v951, %v861
        %v956 = vmul.f32 %v952, %v862
        %v957 = vmul.f32 %v953, %v863
        %v958 = vmul.f32 %v954, %v864
        %v959 = vmul.f32 %v755, 1.6
        %v960 = vmul.f32 %v756, 1.6
        %v961 = vmul.f32 %v757, 1.6
        %v962 = vmul.f32 %v758, 1.6
        %v963 = vsub.f32 %v955, %v959
        %v964 = vsub.f32 %v956, %v960
        %v965 = vsub.f32 %v957, %v961
        %v966 = vsub.f32 %v958, %v962
        %s967 = scalar_lea.vmem %s3, 32
        %v968 = vld [vmem:[%s967] sm:$0xff]
        %v969 = vld [vmem:[%s967 + $0x8] sm:$0xff]
        %v971 = vsel %vm771, %v968, 0
        %v974 = vsel %vm771, %v969, 0
        %976 = vmatprep.subr.mxu0 0.0
        %977 = vmatpush1.msra.mxu0 %v963
        %978 = vmatprep.subr.mxu0 0.0
        %979 = vmatpush1.msra.mxu0 %v964
        %980 = vmatprep.subr.mxu0 0.0
        %981 = vmatpush1.msra.mxu0 %v965
        %982 = vmatprep.subr.mxu0 0.0
        %983 = vmatpush1.msra.mxu0 %v966
        %984 = vmatprep.subr.mxu0 0.0
        %985 = vmatpush1.msra.mxu0 0.0
        %986 = vmatprep.subr.mxu0 0.0
        %987 = vmatpush1.msra.mxu0 0.0
        %988 = vmatprep.subr.mxu0 0.0
        %989 = vmatpush1.msra.mxu0 0.0
        %990 = vmatprep.subr.mxu0 0.0
        %991 = vmatpush1.msra.mxu0 0.0
        %992 = vmatprep.subr.mxu0 0.0
        %993 = vmatpush1.msra.mxu0 0.0
        %994 = vmatprep.subr.mxu0 0.0
        %995 = vmatpush1.msra.mxu0 0.0
        %996 = vmatprep.subr.mxu0 0.0
        %997 = vmatpush1.msra.mxu0 0.0
        %998 = vmatprep.subr.mxu0 0.0
        %999 = vmatpush1.msra.mxu0 0.0
        %1000 = vmatprep.subr.mxu0 0.0
        %1001 = vmatpush1.msra.mxu0 0.0
        %1002 = vmatprep.subr.mxu0 0.0
        %1003 = vmatpush1.msra.mxu0 0.0
        %1004 = vmatprep.subr.mxu0 0.0
        %1005 = vmatpush1.msra.mxu0 0.0
        %1006 = vmatprep.subr.mxu0 0.0
        %1007 = vmatpush1.msra.mxu0 0.0
        %1008 = vmatprep.subr.mxu0 0.0
        %1009 = vmatpush1.msra.mxu0 0.0
        %1010 = vmatprep.subr.mxu0 0.0
        %1011 = vmatpush1.msra.mxu0 0.0
        %1012 = vmatprep.subr.mxu0 0.0
        %1013 = vmatpush1.msra.mxu0 0.0
        %1014 = vmatprep.subr.mxu0 0.0
        %1015 = vmatpush1.msra.mxu0 0.0
        %1016 = vmatprep.subr.mxu0 0.0
        %1017 = vmatpush1.msra.mxu0 0.0
        %1018 = vmatprep.subr.mxu0 0.0
        %1019 = vmatpush1.msra.mxu0 0.0
        %1020 = vmatprep.subr.mxu0 0.0
        %1021 = vmatpush1.msra.mxu0 0.0
        %1022 = vmatprep.subr.mxu0 0.0
        %1023 = vmatpush1.msra.mxu0 0.0
        %1024 = vmatprep.subr.mxu0 0.0
        %1025 = vmatpush1.msra.mxu0 0.0
        %1026 = vmatprep.subr.mxu0 0.0
        %1027 = vmatpush1.msra.mxu0 0.0
        %1028 = vmatprep.subr.mxu0 0.0
        %1029 = vmatpush1.msra.mxu0 0.0
        %1030 = vmatprep.subr.mxu0 0.0
        %1031 = vmatpush1.msra.mxu0 0.0
        %1032 = vmatprep.subr.mxu0 0.0
        %1033 = vmatpush1.msra.mxu0 0.0
        %1034 = vmatprep.subr.mxu0 0.0
        %1035 = vmatpush1.msra.mxu0 0.0
        %1036 = vmatprep.subr.mxu0 0.0
        %1037 = vmatpush1.msra.mxu0 0.0
        %1038 = vmatprep.subr.mxu0 0.0
        %1039 = vmatpush1.msra.mxu0 0.0
        %1040 = vmatprep.mubr.f32.mxu0 0.0
        %1041 = vmatmul.mubr.f32.gmra.mrb[0].mxu0 %v971
        %v1042 = vpop.f32.mrb[0].mxu0
        %v1043 = vadd.f32 0.0, %v1042
        %v1044 = vpop.f32.mrb[0].mxu0
        %1045 = vmatprep.mubr.f32.mxu0 0.0
        %1046 = vmatmul.mubr.f32.gmra.mrb[0].mxu0 %v974
        %v1047 = vpop.f32.mrb[0].mxu0
        %v1048 = vadd.f32 0.0, %v1047
        %v1049 = vpop.f32.mrb[0].mxu0
        %1050 = vdwg.mxu0
        %v1051 = vadd.f32 %v949, %v1043
        %v1052 = vadd.f32 %v950, %v1048
        %v1053 = vmul.f32 %v853, %v963
        %v1054 = vmul.f32 %v854, %v964
        %v1055 = vmul.f32 %v855, %v965
        %v1056 = vmul.f32 %v856, %v966
        %v1057 = vmul.f32 %v861, 2.0833333
        %v1058 = vmul.f32 %v862, 2.0833333
        %v1059 = vmul.f32 %v863, 2.0833333
        %v1060 = vmul.f32 %v864, 2.0833333
        %v1061 = vsub.f32 %v1053, %v1057
        %v1062 = vsub.f32 %v1054, %v1058
        %v1063 = vsub.f32 %v1055, %v1059
        %v1064 = vsub.f32 %v1056, %v1060
        %s1065 = scalar_lea.vmem %s3, 48
        %v1066 = vld [vmem:[%s1065] sm:$0xff]
        %v1067 = vld [vmem:[%s1065 + $0x8] sm:$0xff]
        %v1069 = vsel %vm771, %v1066, 0
        %v1072 = vsel %vm771, %v1067, 0
        %1074 = vmatprep.subr.mxu0 0.0
        %1075 = vmatpush1.msra.mxu0 %v1061
        %1076 = vmatprep.subr.mxu0 0.0
        %1077 = vmatpush1.msra.mxu0 %v1062
        %1078 = vmatprep.subr.mxu0 0.0
        %1079 = vmatpush1.msra.mxu0 %v1063
        %1080 = vmatprep.subr.mxu0 0.0
        %1081 = vmatpush1.msra.mxu0 %v1064
        %1082 = vmatprep.subr.mxu0 0.0
        %1083 = vmatpush1.msra.mxu0 0.0
        %1084 = vmatprep.subr.mxu0 0.0
        %1085 = vmatpush1.msra.mxu0 0.0
        %1086 = vmatprep.subr.mxu0 0.0
        %1087 = vmatpush1.msra.mxu0 0.0
        %1088 = vmatprep.subr.mxu0 0.0
        %1089 = vmatpush1.msra.mxu0 0.0
        %1090 = vmatprep.subr.mxu0 0.0
        %1091 = vmatpush1.msra.mxu0 0.0
        %1092 = vmatprep.subr.mxu0 0.0
        %1093 = vmatpush1.msra.mxu0 0.0
        %1094 = vmatprep.subr.mxu0 0.0
        %1095 = vmatpush1.msra.mxu0 0.0
        %1096 = vmatprep.subr.mxu0 0.0
        %1097 = vmatpush1.msra.mxu0 0.0
        %1098 = vmatprep.subr.mxu0 0.0
        %1099 = vmatpush1.msra.mxu0 0.0
        %1100 = vmatprep.subr.mxu0 0.0
        %1101 = vmatpush1.msra.mxu0 0.0
        %1102 = vmatprep.subr.mxu0 0.0
        %1103 = vmatpush1.msra.mxu0 0.0
        %1104 = vmatprep.subr.mxu0 0.0
        %1105 = vmatpush1.msra.mxu0 0.0
        %1106 = vmatprep.subr.mxu0 0.0
        %1107 = vmatpush1.msra.mxu0 0.0
        %1108 = vmatprep.subr.mxu0 0.0
        %1109 = vmatpush1.msra.mxu0 0.0
        %1110 = vmatprep.subr.mxu0 0.0
        %1111 = vmatpush1.msra.mxu0 0.0
        %1112 = vmatprep.subr.mxu0 0.0
        %1113 = vmatpush1.msra.mxu0 0.0
        %1114 = vmatprep.subr.mxu0 0.0
        %1115 = vmatpush1.msra.mxu0 0.0
        %1116 = vmatprep.subr.mxu0 0.0
        %1117 = vmatpush1.msra.mxu0 0.0
        %1118 = vmatprep.subr.mxu0 0.0
        %1119 = vmatpush1.msra.mxu0 0.0
        %1120 = vmatprep.subr.mxu0 0.0
        %1121 = vmatpush1.msra.mxu0 0.0
        %1122 = vmatprep.subr.mxu0 0.0
        %1123 = vmatpush1.msra.mxu0 0.0
        %1124 = vmatprep.subr.mxu0 0.0
        %1125 = vmatpush1.msra.mxu0 0.0
        %1126 = vmatprep.subr.mxu0 0.0
        %1127 = vmatpush1.msra.mxu0 0.0
        %1128 = vmatprep.subr.mxu0 0.0
        %1129 = vmatpush1.msra.mxu0 0.0
        %1130 = vmatprep.subr.mxu0 0.0
        %1131 = vmatpush1.msra.mxu0 0.0
        %1132 = vmatprep.subr.mxu0 0.0
        %1133 = vmatpush1.msra.mxu0 0.0
        %1134 = vmatprep.subr.mxu0 0.0
        %1135 = vmatpush1.msra.mxu0 0.0
        %1136 = vmatprep.subr.mxu0 0.0
        %1137 = vmatpush1.msra.mxu0 0.0
        %1138 = vmatprep.mubr.f32.mxu0 0.0
        %1139 = vmatmul.mubr.f32.gmra.mrb[0].mxu0 %v1069
        %v1140 = vpop.f32.mrb[0].mxu0
        %v1141 = vadd.f32 0.0, %v1140
        %v1142 = vpop.f32.mrb[0].mxu0
        %1143 = vmatprep.mubr.f32.mxu0 0.0
        %1144 = vmatmul.mubr.f32.gmra.mrb[0].mxu0 %v1072
        %v1145 = vpop.f32.mrb[0].mxu0
        %v1146 = vadd.f32 0.0, %v1145
        %v1147 = vpop.f32.mrb[0].mxu0
        %1148 = vdwg.mxu0
        %v1149 = vadd.f32 %v1051, %v1141
        %v1150 = vadd.f32 %v1052, %v1146
        %v1151 = vld [vmem:[%s6] sm:$0x3]
        %v1152 = vtanh.pop %v1149
        %v1153 = vtanh.pop %v1150
        %v1154 = vmul.f32 %v1152, 2.0
        %v1155 = vmul.f32 %v1153, 2.0
        %v1156 = vadd.f32 %v1154, 0.0
        %v1157 = vadd.f32 %v1155, 0.0
        %v1158 = vld [vmem:[%s5] sm:$0x3]
        %1160 = vset.pattern.permute.xlu0 0
        %1161 = vperm.xlu0 %1160, %v1151
        %v1162 = vpop.permute.xlu0 %1161
        %vm1164 = vcmask 130048
        %v1166 = vsel %vm1164, %v1158, 0
        %1168 = vmatprep.subr.mxu0 0.0
        %1169 = vmatpush1.msra.mxu0 %v1156
        %1170 = vmatprep.subr.mxu0 0.0
        %1171 = vmatpush1.msra.mxu0 %v1157
        %1172 = vmatprep.subr.mxu0 0.0
        %1173 = vmatpush1.msra.mxu0 0.0
        %1174 = vmatprep.subr.mxu0 0.0
        %1175 = vmatpush1.msra.mxu0 0.0
        %1176 = vmatprep.subr.mxu0 0.0
        %1177 = vmatpush1.msra.mxu0 0.0
        %1178 = vmatprep.subr.mxu0 0.0
        %1179 = vmatpush1.msra.mxu0 0.0
        %1180 = vmatprep.subr.mxu0 0.0
        %1181 = vmatpush1.msra.mxu0 0.0
        %1182 = vmatprep.subr.mxu0 0.0
        %1183 = vmatpush1.msra.mxu0 0.0
        %1184 = vmatprep.subr.mxu0 0.0
        %1185 = vmatpush1.msra.mxu0 0.0
        %1186 = vmatprep.subr.mxu0 0.0
        %1187 = vmatpush1.msra.mxu0 0.0
        %1188 = vmatprep.subr.mxu0 0.0
        %1189 = vmatpush1.msra.mxu0 0.0
        %1190 = vmatprep.subr.mxu0 0.0
        %1191 = vmatpush1.msra.mxu0 0.0
        %1192 = vmatprep.subr.mxu0 0.0
        %1193 = vmatpush1.msra.mxu0 0.0
        %1194 = vmatprep.subr.mxu0 0.0
        %1195 = vmatpush1.msra.mxu0 0.0
        %1196 = vmatprep.subr.mxu0 0.0
        %1197 = vmatpush1.msra.mxu0 0.0
        %1198 = vmatprep.subr.mxu0 0.0
        %1199 = vmatpush1.msra.mxu0 0.0
        %1200 = vmatprep.subr.mxu0 0.0
        %1201 = vmatpush1.msra.mxu0 0.0
        %1202 = vmatprep.subr.mxu0 0.0
        %1203 = vmatpush1.msra.mxu0 0.0
        %1204 = vmatprep.subr.mxu0 0.0
        %1205 = vmatpush1.msra.mxu0 0.0
        %1206 = vmatprep.subr.mxu0 0.0
        %1207 = vmatpush1.msra.mxu0 0.0
        %1208 = vmatprep.subr.mxu0 0.0
        %1209 = vmatpush1.msra.mxu0 0.0
        %1210 = vmatprep.subr.mxu0 0.0
        %1211 = vmatpush1.msra.mxu0 0.0
        %1212 = vmatprep.subr.mxu0 0.0
        %1213 = vmatpush1.msra.mxu0 0.0
        %1214 = vmatprep.subr.mxu0 0.0
        %1215 = vmatpush1.msra.mxu0 0.0
        %1216 = vmatprep.subr.mxu0 0.0
        %1217 = vmatpush1.msra.mxu0 0.0
        %1218 = vmatprep.subr.mxu0 0.0
        %1219 = vmatpush1.msra.mxu0 0.0
        %1220 = vmatprep.subr.mxu0 0.0
        %1221 = vmatpush1.msra.mxu0 0.0
        %1222 = vmatprep.subr.mxu0 0.0
        %1223 = vmatpush1.msra.mxu0 0.0
        %1224 = vmatprep.subr.mxu0 0.0
        %1225 = vmatpush1.msra.mxu0 0.0
        %1226 = vmatprep.subr.mxu0 0.0
        %1227 = vmatpush1.msra.mxu0 0.0
        %1228 = vmatprep.subr.mxu0 0.0
        %1229 = vmatpush1.msra.mxu0 0.0
        %1230 = vmatprep.subr.mxu0 0.0
        %1231 = vmatpush1.msra.mxu0 0.0
        %1232 = vmatprep.mubr.f32.mxu0 0.0
        %1233 = vmatmul.mubr.f32.gmra.mrb[0].mxu0 %v1166
        %v1234 = vpop.f32.mrb[0].mxu0
        %v1235 = vadd.f32 %v1162, %v1234
        %v1236 = vpop.f32.mrb[0].mxu0
        %1237 = vdwg.mxu0
        %v1238 = vmul.f32 %v1152, 1.875
        %v1239 = vmul.f32 %v1153, 1.875
        %v1240 = vmul.f32 %v1238, %v1156
        %v1241 = vmul.f32 %v1239, %v1157
        %v1242 = vsub.f32 %v1240, 1.125
        %v1243 = vsub.f32 %v1241, 1.125
        %s1244 = scalar_lea.vmem %s5, 2
        %v1245 = vld [vmem:[%s1244] sm:$0x3]
        %v1247 = vsel %vm1164, %v1245, 0
        %1249 = vmatprep.subr.mxu0 0.0
        %1250 = vmatpush1.msra.mxu0 %v1242
        %1251 = vmatprep.subr.mxu0 0.0
        %1252 = vmatpush1.msra.mxu0 %v1243
        %1253 = vmatprep.subr.mxu0 0.0
        %1254 = vmatpush1.msra.mxu0 0.0
        %1255 = vmatprep.subr.mxu0 0.0
        %1256 = vmatpush1.msra.mxu0 0.0
        %1257 = vmatprep.subr.mxu0 0.0
        %1258 = vmatpush1.msra.mxu0 0.0
        %1259 = vmatprep.subr.mxu0 0.0
        %1260 = vmatpush1.msra.mxu0 0.0
        %1261 = vmatprep.subr.mxu0 0.0
        %1262 = vmatpush1.msra.mxu0 0.0
        %1263 = vmatprep.subr.mxu0 0.0
        %1264 = vmatpush1.msra.mxu0 0.0
        %1265 = vmatprep.subr.mxu0 0.0
        %1266 = vmatpush1.msra.mxu0 0.0
        %1267 = vmatprep.subr.mxu0 0.0
        %1268 = vmatpush1.msra.mxu0 0.0
        %1269 = vmatprep.subr.mxu0 0.0
        %1270 = vmatpush1.msra.mxu0 0.0
        %1271 = vmatprep.subr.mxu0 0.0
        %1272 = vmatpush1.msra.mxu0 0.0
        %1273 = vmatprep.subr.mxu0 0.0
        %1274 = vmatpush1.msra.mxu0 0.0
        %1275 = vmatprep.subr.mxu0 0.0
        %1276 = vmatpush1.msra.mxu0 0.0
        %1277 = vmatprep.subr.mxu0 0.0
        %1278 = vmatpush1.msra.mxu0 0.0
        %1279 = vmatprep.subr.mxu0 0.0
        %1280 = vmatpush1.msra.mxu0 0.0
        %1281 = vmatprep.subr.mxu0 0.0
        %1282 = vmatpush1.msra.mxu0 0.0
        %1283 = vmatprep.subr.mxu0 0.0
        %1284 = vmatpush1.msra.mxu0 0.0
        %1285 = vmatprep.subr.mxu0 0.0
        %1286 = vmatpush1.msra.mxu0 0.0
        %1287 = vmatprep.subr.mxu0 0.0
        %1288 = vmatpush1.msra.mxu0 0.0
        %1289 = vmatprep.subr.mxu0 0.0
        %1290 = vmatpush1.msra.mxu0 0.0
        %1291 = vmatprep.subr.mxu0 0.0
        %1292 = vmatpush1.msra.mxu0 0.0
        %1293 = vmatprep.subr.mxu0 0.0
        %1294 = vmatpush1.msra.mxu0 0.0
        %1295 = vmatprep.subr.mxu0 0.0
        %1296 = vmatpush1.msra.mxu0 0.0
        %1297 = vmatprep.subr.mxu0 0.0
        %1298 = vmatpush1.msra.mxu0 0.0
        %1299 = vmatprep.subr.mxu0 0.0
        %1300 = vmatpush1.msra.mxu0 0.0
        %1301 = vmatprep.subr.mxu0 0.0
        %1302 = vmatpush1.msra.mxu0 0.0
        %1303 = vmatprep.subr.mxu0 0.0
        %1304 = vmatpush1.msra.mxu0 0.0
        %1305 = vmatprep.subr.mxu0 0.0
        %1306 = vmatpush1.msra.mxu0 0.0
        %1307 = vmatprep.subr.mxu0 0.0
        %1308 = vmatpush1.msra.mxu0 0.0
        %1309 = vmatprep.subr.mxu0 0.0
        %1310 = vmatpush1.msra.mxu0 0.0
        %1311 = vmatprep.subr.mxu0 0.0
        %1312 = vmatpush1.msra.mxu0 0.0
        %1313 = vmatprep.mubr.f32.mxu0 0.0
        %1314 = vmatmul.mubr.f32.gmra.mrb[0].mxu0 %v1247
        %v1315 = vpop.f32.mrb[0].mxu0
        %v1316 = vadd.f32 0.0, %v1315
        %v1317 = vpop.f32.mrb[0].mxu0
        %1318 = vdwg.mxu0
        %v1319 = vadd.f32 %v1235, %v1316
        %v1320 = vmul.f32 %v1152, 1.8666667
        %v1321 = vmul.f32 %v1153, 1.8666667
        %v1322 = vmul.f32 %v1320, %v1242
        %v1323 = vmul.f32 %v1321, %v1243
        %v1324 = vmul.f32 %v1156, 1.6
        %v1325 = vmul.f32 %v1157, 1.6
        %v1326 = vsub.f32 %v1322, %v1324
        %v1327 = vsub.f32 %v1323, %v1325
        %s1328 = scalar_lea.vmem %s5, 4
        %v1329 = vld [vmem:[%s1328] sm:$0x3]
        %v1331 = vsel %vm1164, %v1329, 0
        %1333 = vmatprep.subr.mxu0 0.0
        %1334 = vmatpush1.msra.mxu0 %v1326
        %1335 = vmatprep.subr.mxu0 0.0
        %1336 = vmatpush1.msra.mxu0 %v1327
        %1337 = vmatprep.subr.mxu0 0.0
        %1338 = vmatpush1.msra.mxu0 0.0
        %1339 = vmatprep.subr.mxu0 0.0
        %1340 = vmatpush1.msra.mxu0 0.0
        %1341 = vmatprep.subr.mxu0 0.0
        %1342 = vmatpush1.msra.mxu0 0.0
        %1343 = vmatprep.subr.mxu0 0.0
        %1344 = vmatpush1.msra.mxu0 0.0
        %1345 = vmatprep.subr.mxu0 0.0
        %1346 = vmatpush1.msra.mxu0 0.0
        %1347 = vmatprep.subr.mxu0 0.0
        %1348 = vmatpush1.msra.mxu0 0.0
        %1349 = vmatprep.subr.mxu0 0.0
        %1350 = vmatpush1.msra.mxu0 0.0
        %1351 = vmatprep.subr.mxu0 0.0
        %1352 = vmatpush1.msra.mxu0 0.0
        %1353 = vmatprep.subr.mxu0 0.0
        %1354 = vmatpush1.msra.mxu0 0.0
        %1355 = vmatprep.subr.mxu0 0.0
        %1356 = vmatpush1.msra.mxu0 0.0
        %1357 = vmatprep.subr.mxu0 0.0
        %1358 = vmatpush1.msra.mxu0 0.0
        %1359 = vmatprep.subr.mxu0 0.0
        %1360 = vmatpush1.msra.mxu0 0.0
        %1361 = vmatprep.subr.mxu0 0.0
        %1362 = vmatpush1.msra.mxu0 0.0
        %1363 = vmatprep.subr.mxu0 0.0
        %1364 = vmatpush1.msra.mxu0 0.0
        %1365 = vmatprep.subr.mxu0 0.0
        %1366 = vmatpush1.msra.mxu0 0.0
        %1367 = vmatprep.subr.mxu0 0.0
        %1368 = vmatpush1.msra.mxu0 0.0
        %1369 = vmatprep.subr.mxu0 0.0
        %1370 = vmatpush1.msra.mxu0 0.0
        %1371 = vmatprep.subr.mxu0 0.0
        %1372 = vmatpush1.msra.mxu0 0.0
        %1373 = vmatprep.subr.mxu0 0.0
        %1374 = vmatpush1.msra.mxu0 0.0
        %1375 = vmatprep.subr.mxu0 0.0
        %1376 = vmatpush1.msra.mxu0 0.0
        %1377 = vmatprep.subr.mxu0 0.0
        %1378 = vmatpush1.msra.mxu0 0.0
        %1379 = vmatprep.subr.mxu0 0.0
        %1380 = vmatpush1.msra.mxu0 0.0
        %1381 = vmatprep.subr.mxu0 0.0
        %1382 = vmatpush1.msra.mxu0 0.0
        %1383 = vmatprep.subr.mxu0 0.0
        %1384 = vmatpush1.msra.mxu0 0.0
        %1385 = vmatprep.subr.mxu0 0.0
        %1386 = vmatpush1.msra.mxu0 0.0
        %1387 = vmatprep.subr.mxu0 0.0
        %1388 = vmatpush1.msra.mxu0 0.0
        %1389 = vmatprep.subr.mxu0 0.0
        %1390 = vmatpush1.msra.mxu0 0.0
        %1391 = vmatprep.subr.mxu0 0.0
        %1392 = vmatpush1.msra.mxu0 0.0
        %1393 = vmatprep.subr.mxu0 0.0
        %1394 = vmatpush1.msra.mxu0 0.0
        %1395 = vmatprep.subr.mxu0 0.0
        %1396 = vmatpush1.msra.mxu0 0.0
        %1397 = vmatprep.mubr.f32.mxu0 0.0
        %1398 = vmatmul.mubr.f32.gmra.mrb[0].mxu0 %v1331
        %v1399 = vpop.f32.mrb[0].mxu0
        %v1400 = vadd.f32 0.0, %v1399
        %v1401 = vpop.f32.mrb[0].mxu0
        %1402 = vdwg.mxu0
        %v1403 = vadd.f32 %v1319, %v1400
        %v1404 = vmul.f32 %v1238, %v1326
        %v1405 = vmul.f32 %v1239, %v1327
        %v1406 = vmul.f32 %v1242, 2.0833333
        %v1407 = vmul.f32 %v1243, 2.0833333
        %v1408 = vsub.f32 %v1404, %v1406
        %v1409 = vsub.f32 %v1405, %v1407
        %s1410 = scalar_lea.vmem %s5, 6
        %v1411 = vld [vmem:[%s1410] sm:$0x3]
        %v1413 = vsel %vm1164, %v1411, 0
        %1415 = vmatprep.subr.mxu0 0.0
        %1416 = vmatpush1.msra.mxu0 %v1408
        %1417 = vmatprep.subr.mxu0 0.0
        %1418 = vmatpush1.msra.mxu0 %v1409
        %1419 = vmatprep.subr.mxu0 0.0
        %1420 = vmatpush1.msra.mxu0 0.0
        %1421 = vmatprep.subr.mxu0 0.0
        %1422 = vmatpush1.msra.mxu0 0.0
        %1423 = vmatprep.subr.mxu0 0.0
        %1424 = vmatpush1.msra.mxu0 0.0
        %1425 = vmatprep.subr.mxu0 0.0
        %1426 = vmatpush1.msra.mxu0 0.0
        %1427 = vmatprep.subr.mxu0 0.0
        %1428 = vmatpush1.msra.mxu0 0.0
        %1429 = vmatprep.subr.mxu0 0.0
        %1430 = vmatpush1.msra.mxu0 0.0
        %1431 = vmatprep.subr.mxu0 0.0
        %1432 = vmatpush1.msra.mxu0 0.0
        %1433 = vmatprep.subr.mxu0 0.0
        %1434 = vmatpush1.msra.mxu0 0.0
        %1435 = vmatprep.subr.mxu0 0.0
        %1436 = vmatpush1.msra.mxu0 0.0
        %1437 = vmatprep.subr.mxu0 0.0
        %1438 = vmatpush1.msra.mxu0 0.0
        %1439 = vmatprep.subr.mxu0 0.0
        %1440 = vmatpush1.msra.mxu0 0.0
        %1441 = vmatprep.subr.mxu0 0.0
        %1442 = vmatpush1.msra.mxu0 0.0
        %1443 = vmatprep.subr.mxu0 0.0
        %1444 = vmatpush1.msra.mxu0 0.0
        %1445 = vmatprep.subr.mxu0 0.0
        %1446 = vmatpush1.msra.mxu0 0.0
        %1447 = vmatprep.subr.mxu0 0.0
        %1448 = vmatpush1.msra.mxu0 0.0
        %1449 = vmatprep.subr.mxu0 0.0
        %1450 = vmatpush1.msra.mxu0 0.0
        %1451 = vmatprep.subr.mxu0 0.0
        %1452 = vmatpush1.msra.mxu0 0.0
        %1453 = vmatprep.subr.mxu0 0.0
        %1454 = vmatpush1.msra.mxu0 0.0
        %1455 = vmatprep.subr.mxu0 0.0
        %1456 = vmatpush1.msra.mxu0 0.0
        %1457 = vmatprep.subr.mxu0 0.0
        %1458 = vmatpush1.msra.mxu0 0.0
        %1459 = vmatprep.subr.mxu0 0.0
        %1460 = vmatpush1.msra.mxu0 0.0
        %1461 = vmatprep.subr.mxu0 0.0
        %1462 = vmatpush1.msra.mxu0 0.0
        %1463 = vmatprep.subr.mxu0 0.0
        %1464 = vmatpush1.msra.mxu0 0.0
        %1465 = vmatprep.subr.mxu0 0.0
        %1466 = vmatpush1.msra.mxu0 0.0
        %1467 = vmatprep.subr.mxu0 0.0
        %1468 = vmatpush1.msra.mxu0 0.0
        %1469 = vmatprep.subr.mxu0 0.0
        %1470 = vmatpush1.msra.mxu0 0.0
        %1471 = vmatprep.subr.mxu0 0.0
        %1472 = vmatpush1.msra.mxu0 0.0
        %1473 = vmatprep.subr.mxu0 0.0
        %1474 = vmatpush1.msra.mxu0 0.0
        %1475 = vmatprep.subr.mxu0 0.0
        %1476 = vmatpush1.msra.mxu0 0.0
        %1477 = vmatprep.subr.mxu0 0.0
        %1478 = vmatpush1.msra.mxu0 0.0
        %1479 = vmatprep.mubr.f32.mxu0 0.0
        %1480 = vmatmul.mubr.f32.gmra.mrb[0].mxu0 %v1413
        %v1481 = vpop.f32.mrb[0].mxu0
        %v1482 = vadd.f32 0.0, %v1481
        %v1483 = vpop.f32.mrb[0].mxu0
        %1484 = vdwg.mxu0
        %v1485 = vadd.f32 %v1403, %v1482
        %1486 = vst [vmem:[%s269] sm:$0x3] %v1485
        %s1487 = sand.u32 %s181, 1
        %s1488 = scalar_lea.sflag [#allocation3], %s1487
        %s1489 = sand.u32 %s181, 1
        %s1490 = smul.addr %s1489, 2
        %s1491 = scalar_lea.vmem [#allocation2], %s1490
        // Predicated region
        $region49: #{pinnkan_forward.1} parent=47 // pred_check
          %p1492 = pneg %p191
        $region50: #{pinnkan_forward.1} parent=47 // pred_check_branch
          %1494 = sbr.rel (%p1492) target = $region52
        $region51: #{pinnkan_forward.1} parent=47 // pred_region
          %s1496 = ssub.s32 32, 32
          %1497 = vsyncadd %s1488, %s1496
          %s1498 = smul.addr %s21, 32
          %s1499 = scalar_lea.hbm %s7, %s1498
          %s1501 = sshll.u32 %s1491, 4
          %s1502 = int_to_ptr.vmem [resolvable:$true] %s1501
          %1504 = dma.vmem_to_hbm [thread:$0]  %s1502, 32, %s1499, %s1488
        $region52: #{pinnkan_forward.1} parent=47 // pred_fallthru
          _
      $region48: #{pinnkan_forward.1} parent=5 // pred_fallthru
        _
      %p1505 = scmp.le.s32.totalorder 2, %s16
      // Predicated region
      $region53: #{pinnkan_forward.1} parent=5 // pred_check
        %p1506 = pneg %p1505
      $region54: #{pinnkan_forward.1} parent=5 // pred_check_branch
        %1508 = sbr.rel (%p1506) target = $region56
      $region55: #{pinnkan_forward.1} parent=5 // pred_region
        %s1509 = ssub.s32 %s16, 2
        // Predicated region
        $region57: #{pinnkan_forward.1} parent=55 // pred_check
          %p1510 = pneg %p197
        $region58: #{pinnkan_forward.1} parent=55 // pred_check_branch
          %1512 = sbr.rel (%p1510) target = $region60
        $region59: #{pinnkan_forward.1} parent=55 // pred_region
          %s1513 = sand.u32 %s182, 1
          %s1514 = scalar_lea.sflag [#allocation3], %s1513
          %s1515 = sand.u32 %s182, 1
          %s1516 = smul.addr %s1515, 2
          %s1517 = scalar_lea.vmem [#allocation2], %s1516
          %1518 = dma.done %s1514, 32
        $region60: #{pinnkan_forward.1} parent=55 // pred_fallthru
          _
      $region56: #{pinnkan_forward.1} parent=5 // pred_fallthru
        _
    $region6: #{pinnkan_forward.1} parent=1 // loop_footer
      %s20 = sadd.s32 1, %s16
    $region7: #{pinnkan_forward.1} parent=1 // loop_footer_branch
      %15 = sbr.rel target = $region3
    $region8: #{pinnkan_forward.1} parent=1 // loop_exit
      _
    %1519 = vsyncpa [#allocation3], 1
    %s1520 = scalar_lea.sflag [#allocation3], 1
    %1521 = vsyncpa %s1520, 1

</llo_original>
